<compile_context>
chip_gen: v7x
topology: tpu7x:2x2x1
jax: 0.10.0
libtpu: 0.0.40
codegen_flags: <defaults>
</compile_context>

<pallas_src>
import jax
import jax.numpy as jnp
from jax.experimental import pallas as pl
from jax.experimental.pallas import tpu as pltpu


_PALLAS_MIN_S = 256  # below this, launch/pipeline overhead dominates -> einsum fallback


# ---------------------------------------------------------------------------
# Pallas kernel: fused Conv1d(1x1) x3 head with folded BN + ReLU
# ---------------------------------------------------------------------------
def _head_kernel(x_ref, w1_ref, b1_ref, w2_ref, b2_ref, w3_ref, b3_ref, o_ref):
    # In-kernel bf16 cast (no extra wrapper-side HBM pass).
    x = x_ref[...].astype(jnp.bfloat16)                                  # (256, T)
    h = jnp.dot(w1_ref[...], x, preferred_element_type=jnp.float32)     # (128, T) f32
    h = jnp.maximum(h + b1_ref[...], 0.0)
    h = jnp.dot(w2_ref[...], h.astype(jnp.bfloat16),
                preferred_element_type=jnp.float32)                      # (128, T)
    h = jnp.maximum(h + b2_ref[...], 0.0)
    h = jnp.dot(w3_ref[...], h.astype(jnp.bfloat16),
                preferred_element_type=jnp.float32)                      # (3*A, T)
    o_ref[...] = (h + b3_ref[...]).astype(o_ref.dtype)


def _full(arr):
    """Resident block: full array, constant index_map (stays in VMEM across steps)."""
    return pl.BlockSpec(arr.shape, lambda b, s, _n=arr.ndim: (0,) * _n)


def _round_up(x, m):
    return ((x + m - 1) // m) * m


def _einsum_head(x_bcs, params):
    """Small-problem fallback; same dtype handling as the kernel (bf16 dots, f32 acc)."""
    (w1, b1), (w2, b2), (w3, b3) = params
    x = x_bcs.astype(jnp.bfloat16)
    h = jnp.einsum('oc,bcs->bos', w1.astype(jnp.bfloat16), x,
                   preferred_element_type=jnp.float32)
    h = jnp.maximum(h + b1[None], 0.0)
    h = jnp.einsum('oc,bcs->bos', w2.astype(jnp.bfloat16), h.astype(jnp.bfloat16),
                   preferred_element_type=jnp.float32)
    h = jnp.maximum(h + b2[None], 0.0)
    h = jnp.einsum('oc,bcs->bos', w3.astype(jnp.bfloat16), h.astype(jnp.bfloat16),
                   preferred_element_type=jnp.float32)
    return h + b3[None]


def conv_head(x_bcs, params, *, out_dtype=jnp.float32):
    """x_bcs: (B, C_in, S) float32 -> (B, C_out, S) via fused 1x1-conv MLP head."""
    B, C_in, S = x_bcs.shape
    (w1, b1), (w2, b2), (w3, b3) = params
    C_hid = w1.shape[0]
    C_out = w3.shape[0]

    # Tiny spatial extent: Pallas buys nothing, avoid a regression.
    if S < _PALLAS_MIN_S:
        return _einsum_head(x_bcs, params).astype(out_dtype)

    # Lane-dense spatial tile; large enough to amortize per-grid-step overhead.
    tile_s = min(_round_up(S, 128), 2048)
    # v7x has 2 TensorCores sharded over the "parallel" grid axes: if B == 1,
    # split the spatial axis so both cores get work.
    if B == 1 and pl.cdiv(S, tile_s) < 2 and S > 128:
        tile_s = _round_up(pl.cdiv(S, 2), 128)

    grid = (B, pl.cdiv(S, tile_s))

    w1b = w1.astype(jnp.bfloat16)
    w2b = w2.astype(jnp.bfloat16)
    w3b = w3.astype(jnp.bfloat16)

    flops = 2 * B * S * (C_in * C_hid + C_hid * C_hid + C_hid * C_out)
    bytes_accessed = (B * C_in * S * x_bcs.dtype.itemsize
                      + B * C_out * S * jnp.dtype(out_dtype).itemsize
                      + 2 * (w1b.size + w2b.size + w3b.size)
                      + 4 * (b1.size + b2.size + b3.size))

    return pl.pallas_call(
        _head_kernel,
        out_shape=jax.ShapeDtypeStruct((B, C_out, S), out_dtype),
        grid_spec=pltpu.PrefetchScalarGridSpec(
            num_scalar_prefetch=0,
            grid=grid,
            in_specs=[
                pl.BlockSpec((None, C_in, tile_s), lambda b, s: (b, 0, s)),
                _full(w1b), _full(b1),
                _full(w2b), _full(b2),
                _full(w3b), _full(b3),
            ],
            out_specs=pl.BlockSpec((None, C_out, tile_s), lambda b, s: (b, 0, s)),
        ),
        compiler_params=pltpu.CompilerParams(
            dimension_semantics=("parallel", "parallel")),
        cost_estimate=pl.CostEstimate(flops=flops, transcendentals=0,
                                      bytes_accessed=bytes_accessed),
    )(x_bcs, w1b, b1, w2b, b2, w3b, b3)


# ---------------------------------------------------------------------------
# GraspPoseParametersDetection forward
# ---------------------------------------------------------------------------
def grasp_pose_parameters_detection_forward(vp_features, params, *, num_angle,
                                            record=True, end_points=None):
    B, C, num_seed, num_depth = vp_features.shape
    S = num_seed * num_depth
    x = vp_features.reshape(B, C, S)                       # == torch .view, no transpose
    out = conv_head(x, params)                             # (B, 3*num_angle, S)
    out = out.reshape(B, 3 * num_angle, num_seed, num_depth)

    if record:
        end_points = {} if end_points is None else dict(end_points)
        end_points['grasp_score_pred'] = out[:, 0:num_angle]
        end_points['grasp_angle_cls_pred'] = out[:, num_angle:2 * num_angle]
        end_points['grasp_width_pred'] = out[:, 2 * num_angle:3 * num_angle]
        return end_points
    return out


# ---------------------------------------------------------------------------
# Deterministic parameter init: Conv1d weights/biases with BN folded in
# ---------------------------------------------------------------------------
def init_params(key, num_angle, eps=1e-5):
    layer_dims = [(256, 128, True), (128, 128, True), (128, 3 * num_angle, False)]
    params = []
    for cin, cout, has_bn in layer_dims:
        key, kw, kb, kg, kbt, km, kv = jax.random.split(key, 7)
        bound = cin ** -0.5
        w = jax.random.uniform(kw, (cout, cin), jnp.float32, -bound, bound)
        b = jax.random.uniform(kb, (cout,), jnp.float32, -bound, bound)
        if has_bn:
            gamma = 1.0 + 0.1 * jax.random.normal(kg, (cout,), jnp.float32)
            beta = 0.1 * jax.random.normal(kbt, (cout,), jnp.float32)
            mean = 0.1 * jax.random.normal(km, (cout,), jnp.float32)
            var = 0.5 + jnp.abs(jax.random.normal(kv, (cout,), jnp.float32))
            scale = gamma / jnp.sqrt(var + eps)
            w = w * scale[:, None]                         # fold BN scale into conv weight
            b = scale * b + beta - mean * scale            # fold BN shift into conv bias
        params.append((w, b[:, None]))                     # bias kept as (Cout, 1)
    return params


# ---------------------------------------------------------------------------
# Pure-JAX reference (same dtype handling as the kernel: bf16 dots, f32 accum)
# ---------------------------------------------------------------------------
def ref_forward(vp_features, params):
    B, C, ns, nd = vp_features.shape
    h = _einsum_head(vp_features.reshape(B, C, ns * nd), params)
    return h.reshape(B, -1, ns, nd)


if __name__ == "__main__":
    key = jax.random.PRNGKey(0)
    B, num_seed, num_depth, num_angle = 2, 80, 4, 12    # S = 320 (>= 256 -> Pallas path)

    kx, kp = jax.random.split(key)
    vp_features = jax.random.normal(kx, (B, 256, num_seed, num_depth), jnp.float32)
    params = init_params(kp, num_angle)

    # record=True path (dict of split predictions)
    end_points = grasp_pose_parameters_detection_forward(
        vp_features, params, num_angle=num_angle, record=True)
    end_points = jax.block_until_ready(end_points)

    # record=False path (raw head output)
    out_full = grasp_pose_parameters_detection_forward(
        vp_features, params, num_angle=num_angle, record=False)
    out_full = jax.block_until_ready(out_full)

    # Correctness checks against a pure-JAX reference.
    ref = ref_forward(vp_features, params)
    assert out_full.shape == (B, 3 * num_angle, num_seed, num_depth), out_full.shape
    recon = jnp.concatenate([end_points['grasp_score_pred'],
                             end_points['grasp_angle_cls_pred'],
                             end_points['grasp_width_pred']], axis=1)
    err1 = float(jnp.max(jnp.abs(out_full - ref)))
    err2 = float(jnp.max(jnp.abs(recon - ref)))
    assert jnp.allclose(out_full, ref, atol=1e-2, rtol=1e-2), err1
    assert jnp.allclose(recon, ref, atol=1e-2, rtol=1e-2), err2
    assert end_points['grasp_score_pred'].shape == (B, num_angle, num_seed, num_depth)

    # Small-S fallback path (S=64 < threshold -> einsum, avoids Pallas overhead).
    vp_small = jax.random.normal(kx, (B, 256, 16, 4), jnp.float32)
    out_small = jax.block_until_ready(
        grasp_pose_parameters_detection_forward(
            vp_small, params, num_angle=num_angle, record=False))
    ref_small = ref_forward(vp_small, params)
    err3 = float(jnp.max(jnp.abs(out_small - ref_small)))
    assert jnp.allclose(out_small, ref_small, atol=1e-2, rtol=1e-2), err3

    print("KERNEL_OK")
</pallas_src>

<mosaic_0001>
module attributes {stable_mosaic.version = 11 : i64} {
  func.func @_head_kernel(%arg0: i32, %arg1: i32, %arg2: memref<1x256x384xf32, #tpu.memory_space<vmem>>, %arg3: memref<128x256xbf16, #tpu.memory_space<vmem>>, %arg4: memref<128x1xf32, #tpu.memory_space<vmem>>, %arg5: memref<128x128xbf16, #tpu.memory_space<vmem>>, %arg6: memref<128x1xf32, #tpu.memory_space<vmem>>, %arg7: memref<36x128xbf16, #tpu.memory_space<vmem>>, %arg8: memref<36x1xf32, #tpu.memory_space<vmem>>, %arg9: memref<1x36x384xf32, #tpu.memory_space<vmem>>) attributes {dimension_semantics = [#tpu.dimension_semantics<parallel>, #tpu.dimension_semantics<parallel>], iteration_bounds = array<i64: 2, 1>, scalar_prefetch = 0 : i64, scratch_operands = 0 : i64, tpu.core_type = #tpu.core_type<tc>, window_params = [{transform_indices = @transform_0, window_bounds = array<i64: 1, 256, 384>}, {pipeline_mode = #tpu.pipeline_mode<synchronous>, transform_indices = @transform_1, window_bounds = array<i64: 128, 256>}, {pipeline_mode = #tpu.pipeline_mode<synchronous>, transform_indices = @transform_2, window_bounds = array<i64: 128, 1>}, {pipeline_mode = #tpu.pipeline_mode<synchronous>, transform_indices = @transform_3, window_bounds = array<i64: 128, 128>}, {pipeline_mode = #tpu.pipeline_mode<synchronous>, transform_indices = @transform_4, window_bounds = array<i64: 128, 1>}, {pipeline_mode = #tpu.pipeline_mode<synchronous>, transform_indices = @transform_5, window_bounds = array<i64: 36, 128>}, {pipeline_mode = #tpu.pipeline_mode<synchronous>, transform_indices = @transform_6, window_bounds = array<i64: 36, 1>}, {transform_indices = @transform_7, window_bounds = array<i64: 1, 36, 384>}]} {
    %c0 = arith.constant 0 : index
    %c0_0 = arith.constant 0 : index
    %c0_1 = arith.constant 0 : index
    %0 = vector.load %arg2[%c0, %c0_0, %c0_1] : memref<1x256x384xf32, #tpu.memory_space<vmem>>, vector<1x256x384xf32>
    %1 = vector.shape_cast %0 : vector<1x256x384xf32> to vector<256x384xf32>
    %2 = arith.truncf %1 : vector<256x384xf32> to vector<256x384xbf16>
    %c0_2 = arith.constant 0 : index
    %c0_3 = arith.constant 0 : index
    %3 = vector.load %arg3[%c0_2, %c0_3] : memref<128x256xbf16, #tpu.memory_space<vmem>>, vector<128x256xbf16>
    %cst = arith.constant dense<0.000000e+00> : vector<128x384xf32>
    %4 = tpu.matmul %3, %2, %cst {dimension_numbers = #tpu.dot_dimension_numbers<[1], [0], [0], [1], [0, 0, 1, 1], [], []>} : vector<128x256xbf16>, vector<256x384xbf16>, vector<128x384xf32> -> vector<128x384xf32>
    %c0_4 = arith.constant 0 : index
    %c0_5 = arith.constant 0 : index
    %5 = vector.load %arg4[%c0_4, %c0_5] : memref<128x1xf32, #tpu.memory_space<vmem>>, vector<128x1xf32>
    %6 = vector.broadcast %5 : vector<128x1xf32> to vector<128x384xf32>
    %7 = arith.addf %4, %6 : vector<128x384xf32>
    %cst_6 = arith.constant 0.000000e+00 : f32
    %8 = vector.broadcast %cst_6 : f32 to vector<128x384xf32>
    %9 = arith.maximumf %7, %8 : vector<128x384xf32>
    %c0_7 = arith.constant 0 : index
    %c0_8 = arith.constant 0 : index
    %10 = vector.load %arg5[%c0_7, %c0_8] : memref<128x128xbf16, #tpu.memory_space<vmem>>, vector<128x128xbf16>
    %11 = arith.truncf %9 : vector<128x384xf32> to vector<128x384xbf16>
    %cst_9 = arith.constant dense<0.000000e+00> : vector<128x384xf32>
    %12 = tpu.matmul %10, %11, %cst_9 {dimension_numbers = #tpu.dot_dimension_numbers<[1], [0], [0], [1], [0, 0, 1, 1], [], []>} : vector<128x128xbf16>, vector<128x384xbf16>, vector<128x384xf32> -> vector<128x384xf32>
    %c0_10 = arith.constant 0 : index
    %c0_11 = arith.constant 0 : index
    %13 = vector.load %arg6[%c0_10, %c0_11] : memref<128x1xf32, #tpu.memory_space<vmem>>, vector<128x1xf32>
    %14 = vector.broadcast %13 : vector<128x1xf32> to vector<128x384xf32>
    %15 = arith.addf %12, %14 : vector<128x384xf32>
    %cst_12 = arith.constant 0.000000e+00 : f32
    %16 = vector.broadcast %cst_12 : f32 to vector<128x384xf32>
    %17 = arith.maximumf %15, %16 : vector<128x384xf32>
    %c0_13 = arith.constant 0 : index
    %c0_14 = arith.constant 0 : index
    %18 = vector.load %arg7[%c0_13, %c0_14] : memref<36x128xbf16, #tpu.memory_space<vmem>>, vector<36x128xbf16>
    %19 = arith.truncf %17 : vector<128x384xf32> to vector<128x384xbf16>
    %cst_15 = arith.constant dense<0.000000e+00> : vector<36x384xf32>
    %20 = tpu.matmul %18, %19, %cst_15 {dimension_numbers = #tpu.dot_dimension_numbers<[1], [0], [0], [1], [0, 0, 1, 1], [], []>} : vector<36x128xbf16>, vector<128x384xbf16>, vector<36x384xf32> -> vector<36x384xf32>
    %c0_16 = arith.constant 0 : index
    %c0_17 = arith.constant 0 : index
    %21 = vector.load %arg8[%c0_16, %c0_17] : memref<36x1xf32, #tpu.memory_space<vmem>>, vector<36x1xf32>
    %22 = vector.broadcast %21 : vector<36x1xf32> to vector<36x384xf32>
    %23 = arith.addf %20, %22 : vector<36x384xf32>
    %c0_18 = arith.constant 0 : index
    %c0_19 = arith.constant 0 : index
    %c0_20 = arith.constant 0 : index
    %24 = vector.load %arg9[%c0_18, %c0_19, %c0_20] : memref<1x36x384xf32, #tpu.memory_space<vmem>>, vector<1x36x384xf32>
    %25 = vector.shape_cast %24 : vector<1x36x384xf32> to vector<36x384xf32>
    %26 = vector.shape_cast %23 : vector<36x384xf32> to vector<1x36x384xf32>
    tpu.vector_store %arg9[%c0_18, %c0_19, %c0_20], %26 {strides = array<i32>} : memref<1x36x384xf32, #tpu.memory_space<vmem>>, vector<1x36x384xf32>,
    return
  }
  func.func @transform_0(%arg0: i32, %arg1: i32) -> (i32, i32, i32) {
    %c0_i32 = arith.constant 0 : i32
    %c0_i32_0 = arith.constant 0 : i32
    return %arg0, %c0_i32, %arg1 : i32, i32, i32
  }
  func.func @transform_1(%arg0: i32, %arg1: i32) -> (i32, i32) {
    %c0_i32 = arith.constant 0 : i32
    %c0_i32_0 = arith.constant 0 : i32
    %c0_i32_1 = arith.constant 0 : i32
    return %c0_i32, %c0_i32_0 : i32, i32
  }
  func.func @transform_2(%arg0: i32, %arg1: i32) -> (i32, i32) {
    %c0_i32 = arith.constant 0 : i32
    %c0_i32_0 = arith.constant 0 : i32
    %c0_i32_1 = arith.constant 0 : i32
    return %c0_i32, %c0_i32_0 : i32, i32
  }
  func.func @transform_3(%arg0: i32, %arg1: i32) -> (i32, i32) {
    %c0_i32 = arith.constant 0 : i32
    %c0_i32_0 = arith.constant 0 : i32
    %c0_i32_1 = arith.constant 0 : i32
    return %c0_i32, %c0_i32_0 : i32, i32
  }
  func.func @transform_4(%arg0: i32, %arg1: i32) -> (i32, i32) {
    %c0_i32 = arith.constant 0 : i32
    %c0_i32_0 = arith.constant 0 : i32
    %c0_i32_1 = arith.constant 0 : i32
    return %c0_i32, %c0_i32_0 : i32, i32
  }
  func.func @transform_5(%arg0: i32, %arg1: i32) -> (i32, i32) {
    %c0_i32 = arith.constant 0 : i32
    %c0_i32_0 = arith.constant 0 : i32
    %c0_i32_1 = arith.constant 0 : i32
    return %c0_i32, %c0_i32_0 : i32, i32
  }
  func.func @transform_6(%arg0: i32, %arg1: i32) -> (i32, i32) {
    %c0_i32 = arith.constant 0 : i32
    %c0_i32_0 = arith.constant 0 : i32
    %c0_i32_1 = arith.constant 0 : i32
    return %c0_i32, %c0_i32_0 : i32, i32
  }
  func.func @transform_7(%arg0: i32, %arg1: i32) -> (i32, i32, i32) {
    %c0_i32 = arith.constant 0 : i32
    %c0_i32_0 = arith.constant 0 : i32
    return %arg0, %c0_i32, %arg1 : i32, i32, i32
  }
}

</mosaic_0001>

<llo_original>
// kernel: tpu_custom_call.1
$region0: #{tpu_custom_call.1}
  #allocation0 [shape = 'u32[]', space=smem, size = 0x4, offset = 0x4, fixed_abs, tag = 'smem constant byte address 0x4 - core index']
  #allocation1 [shape = 'u32[144,128]{1,0:T(1,128)}', space=vmem, size = 0x12000, scoped, tag = 'internal scratch']
  %s0 = inlined_call_operand.vmem [shape: f32[2,256,320], index: 0, kind: input, shape index: {}]
  %s1 = inlined_call_operand.vmem [shape: bf16[128,256], index: 1, kind: input, shape index: {}]
  %s2 = inlined_call_operand.vmem [shape: f32[128,1], index: 2, kind: input, shape index: {}]
  %s3 = inlined_call_operand.vmem [shape: bf16[128,128], index: 3, kind: input, shape index: {}]
  %s4 = inlined_call_operand.vmem [shape: f32[128,1], index: 4, kind: input, shape index: {}]
  %s5 = inlined_call_operand.vmem [shape: bf16[36,128], index: 5, kind: input, shape index: {}]
  %s6 = inlined_call_operand.vmem [shape: f32[36,1], index: 6, kind: input, shape index: {}]
  %s7 = inlined_call_operand.vmem [shape: f32[2,36,320], index: 7, kind: output, shape index: {}]
  %s8 = sld [smem:[#allocation0]]
  $region61: #{tpu_custom_call.1} parent=0
    _
  %s10 = ssub.s32 1, %s8
  %s11 = scalar_select 0, %s10, %s8
  loop: start=0, step=1, limit=4
  $region2: #{tpu_custom_call.1} parent=0 // loop_pre_header
    _
  $region3: #{tpu_custom_call.1} parent=0 // loop_header
    %s13 = sphi 0, %s17
    %p14 = scmp.ge.s32.totalorder %s13, 4
    %s20 = sphi 0, %s32
    %s21 = sphi 0, %s28
    %s22 = sphi 0, %s20
    %s23 = sphi 0, %s21
    %s24 = sphi 0, %s22
    %s25 = sphi 0, %s23
    %s37 = sphi 0, %s39
    %s40 = sphi 0, %s37
    %s41 = sphi 0, %s40
    %s57 = sphi 0, %s41
    %s61 = sphi 0, %s61
    %s63 = sphi 0, %s61
    %s64 = sphi 0, %s63
    %s78 = sphi 0, %s64
    %s82 = sphi 0, %s82
    %s84 = sphi 0, %s82
    %s85 = sphi 0, %s84
    %s99 = sphi 0, %s85
    %s103 = sphi 0, %s103
    %s105 = sphi 0, %s103
    %s106 = sphi 0, %s105
    %s120 = sphi 0, %s106
    %s124 = sphi 0, %s124
    %s126 = sphi 0, %s124
    %s127 = sphi 0, %s126
    %s141 = sphi 0, %s127
    %s145 = sphi 0, %s145
    %s147 = sphi 0, %s145
    %s148 = sphi 0, %s147
    %s162 = sphi 0, %s148
    %s166 = sphi 0, %s166
    %s168 = sphi 0, %s166
    %s169 = sphi 0, %s168
    %s183 = sphi 0, %s169
    %s191 = sphi 0, %s193
    %s194 = sphi 0, %s191
    %s195 = sphi 0, %s194
    %s211 = sphi 0, %s195
  $region4: #{tpu_custom_call.1} parent=0 // loop_header_branch
    %16 = sbr.rel (%p14) target = $region8
  $region5: #{tpu_custom_call.1} parent=0 // loop_body
    %s18 = ssub.s32 %s13, 1
    %s19 = ssub.s32 %s13, 2
    %s26 = sadd.s32 1, %s21
    %p27 = scmp.ge.s32.totalorder %s26, 1
    %s28 = scalar_select %p27, 0, %s26
    %s29 = sadd.s32 1, %s20
    %s30 = scalar_select %p27, %s29, %s20
    %p31 = scmp.ge.s32.totalorder %s30, 2
    %s32 = scalar_select %p31, 0, %s30
    %s33 = ssub.s32 %s20, %s32
    %s34 = ssub.s32 %s21, %s28
    %s35 = sor.u32 %s33, %s34
    %p36 = scmp.eq.s32.totalorder %s35, 0
    %s38 = sadd.s32 %s37, 1
    %s39 = scalar_select %p36, %s37, %s38
    %p42 = pneg %p36
    %p43 = scmp.eq.s32.totalorder %s13, 1
    %p44 = por %p42, %p43
    %p45 = scmp.ne.s32.totalorder %s37, %s40
    %p46 = scmp.eq.s32.totalorder %s13, 0
    %p47 = por %p45, %p46
    %p48 = scmp.ne.s32.totalorder %s37, %s40
    %p49 = scmp.eq.s32.totalorder %s18, 1
    %p50 = por %p48, %p49
    %p51 = scmp.ne.s32.totalorder %s40, %s41
    %p52 = scmp.eq.s32.totalorder %s18, 0
    %p53 = por %p51, %p52
    %p54 = scmp.ne.s32.totalorder %s40, %s41
    %p55 = scmp.eq.s32.totalorder %s19, 1
    %p56 = por %p54, %p55
    %p58 = scmp.ne.s32.totalorder %s41, %s57
    %p59 = scmp.eq.s32.totalorder %s19, 0
    %p60 = por %p58, %p59
    %s62 = sadd.s32 %s61, 1
    %p65 = scmp.eq.s32.totalorder %s13, 1
    %p66 = scmp.ne.s32.totalorder %s61, %s63
    %p67 = scmp.eq.s32.totalorder %s13, 0
    %p68 = por %p66, %p67
    %p69 = scmp.ne.s32.totalorder %s61, %s63
    %p70 = scmp.eq.s32.totalorder %s18, 1
    %p71 = por %p69, %p70
    %p72 = scmp.ne.s32.totalorder %s63, %s64
    %p73 = scmp.eq.s32.totalorder %s18, 0
    %p74 = por %p72, %p73
    %p75 = scmp.ne.s32.totalorder %s63, %s64
    %p76 = scmp.eq.s32.totalorder %s19, 1
    %p77 = por %p75, %p76
    %p79 = scmp.ne.s32.totalorder %s64, %s78
    %p80 = scmp.eq.s32.totalorder %s19, 0
    %p81 = por %p79, %p80
    %s83 = sadd.s32 %s82, 1
    %p86 = scmp.eq.s32.totalorder %s13, 1
    %p87 = scmp.ne.s32.totalorder %s82, %s84
    %p88 = scmp.eq.s32.totalorder %s13, 0
    %p89 = por %p87, %p88
    %p90 = scmp.ne.s32.totalorder %s82, %s84
    %p91 = scmp.eq.s32.totalorder %s18, 1
    %p92 = por %p90, %p91
    %p93 = scmp.ne.s32.totalorder %s84, %s85
    %p94 = scmp.eq.s32.totalorder %s18, 0
    %p95 = por %p93, %p94
    %p96 = scmp.ne.s32.totalorder %s84, %s85
    %p97 = scmp.eq.s32.totalorder %s19, 1
    %p98 = por %p96, %p97
    %p100 = scmp.ne.s32.totalorder %s85, %s99
    %p101 = scmp.eq.s32.totalorder %s19, 0
    %p102 = por %p100, %p101
    %s104 = sadd.s32 %s103, 1
    %p107 = scmp.eq.s32.totalorder %s13, 1
    %p108 = scmp.ne.s32.totalorder %s103, %s105
    %p109 = scmp.eq.s32.totalorder %s13, 0
    %p110 = por %p108, %p109
    %p111 = scmp.ne.s32.totalorder %s103, %s105
    %p112 = scmp.eq.s32.totalorder %s18, 1
    %p113 = por %p111, %p112
    %p114 = scmp.ne.s32.totalorder %s105, %s106
    %p115 = scmp.eq.s32.totalorder %s18, 0
    %p116 = por %p114, %p115
    %p117 = scmp.ne.s32.totalorder %s105, %s106
    %p118 = scmp.eq.s32.totalorder %s19, 1
    %p119 = por %p117, %p118
    %p121 = scmp.ne.s32.totalorder %s106, %s120
    %p122 = scmp.eq.s32.totalorder %s19, 0
    %p123 = por %p121, %p122
    %s125 = sadd.s32 %s124, 1
    %p128 = scmp.eq.s32.totalorder %s13, 1
    %p129 = scmp.ne.s32.totalorder %s124, %s126
    %p130 = scmp.eq.s32.totalorder %s13, 0
    %p131 = por %p129, %p130
    %p132 = scmp.ne.s32.totalorder %s124, %s126
    %p133 = scmp.eq.s32.totalorder %s18, 1
    %p134 = por %p132, %p133
    %p135 = scmp.ne.s32.totalorder %s126, %s127
    %p136 = scmp.eq.s32.totalorder %s18, 0
    %p137 = por %p135, %p136
    %p138 = scmp.ne.s32.totalorder %s126, %s127
    %p139 = scmp.eq.s32.totalorder %s19, 1
    %p140 = por %p138, %p139
    %p142 = scmp.ne.s32.totalorder %s127, %s141
    %p143 = scmp.eq.s32.totalorder %s19, 0
    %p144 = por %p142, %p143
    %s146 = sadd.s32 %s145, 1
    %p149 = scmp.eq.s32.totalorder %s13, 1
    %p150 = scmp.ne.s32.totalorder %s145, %s147
    %p151 = scmp.eq.s32.totalorder %s13, 0
    %p152 = por %p150, %p151
    %p153 = scmp.ne.s32.totalorder %s145, %s147
    %p154 = scmp.eq.s32.totalorder %s18, 1
    %p155 = por %p153, %p154
    %p156 = scmp.ne.s32.totalorder %s147, %s148
    %p157 = scmp.eq.s32.totalorder %s18, 0
    %p158 = por %p156, %p157
    %p159 = scmp.ne.s32.totalorder %s147, %s148
    %p160 = scmp.eq.s32.totalorder %s19, 1
    %p161 = por %p159, %p160
    %p163 = scmp.ne.s32.totalorder %s148, %s162
    %p164 = scmp.eq.s32.totalorder %s19, 0
    %p165 = por %p163, %p164
    %s167 = sadd.s32 %s166, 1
    %p170 = scmp.eq.s32.totalorder %s13, 1
    %p171 = scmp.ne.s32.totalorder %s166, %s168
    %p172 = scmp.eq.s32.totalorder %s13, 0
    %p173 = por %p171, %p172
    %p174 = scmp.ne.s32.totalorder %s166, %s168
    %p175 = scmp.eq.s32.totalorder %s18, 1
    %p176 = por %p174, %p175
    %p177 = scmp.ne.s32.totalorder %s168, %s169
    %p178 = scmp.eq.s32.totalorder %s18, 0
    %p179 = por %p177, %p178
    %p180 = scmp.ne.s32.totalorder %s168, %s169
    %p181 = scmp.eq.s32.totalorder %s19, 1
    %p182 = por %p180, %p181
    %p184 = scmp.ne.s32.totalorder %s169, %s183
    %p185 = scmp.eq.s32.totalorder %s19, 0
    %p186 = por %p184, %p185
    %s187 = ssub.s32 %s20, %s32
    %s188 = ssub.s32 %s21, %s28
    %s189 = sor.u32 %s187, %s188
    %p190 = scmp.eq.s32.totalorder %s189, 0
    %s192 = sadd.s32 %s191, 1
    %s193 = scalar_select %p190, %s191, %s192
    %p196 = pneg %p190
    %p197 = scmp.eq.s32.totalorder %s13, 1
    %p198 = por %p196, %p197
    %p199 = scmp.ne.s32.totalorder %s191, %s194
    %p200 = scmp.eq.s32.totalorder %s13, 0
    %p201 = por %p199, %p200
    %p202 = scmp.ne.s32.totalorder %s191, %s194
    %p203 = scmp.eq.s32.totalorder %s18, 1
    %p204 = por %p202, %p203
    %p205 = scmp.ne.s32.totalorder %s194, %s195
    %p206 = scmp.eq.s32.totalorder %s18, 0
    %p207 = por %p205, %p206
    %p208 = scmp.ne.s32.totalorder %s194, %s195
    %p209 = scmp.eq.s32.totalorder %s19, 1
    %p210 = por %p208, %p209
    %p212 = scmp.ne.s32.totalorder %s195, %s211
    %p213 = scmp.eq.s32.totalorder %s19, 0
    %p214 = por %p212, %p213
    %p215 = scmp.le.s32.totalorder 1, %s13
    %p216 = scmp.lt.s32.totalorder %s13, 3
    %p217 = pnand %p215, %p216
    %p218 = pneg %p217
    // Predicated region
    $region9: #{tpu_custom_call.1} parent=5 // pred_check
      _
    $region10: #{tpu_custom_call.1} parent=5 // pred_check_branch
      %220 = sbr.rel (%p217) target = $region12
    $region11: #{tpu_custom_call.1} parent=5 // pred_region
      %s221 = ssub.s32 %s13, 1
      // Predicated region
      $region13: #{tpu_custom_call.1} parent=11 // pred_check
        %p222 = pneg %p74
      $region14: #{tpu_custom_call.1} parent=11 // pred_check_branch
        %224 = sbr.rel (%p222) target = $region16
      $region15: #{tpu_custom_call.1} parent=11 // pred_region
        _
      $region16: #{tpu_custom_call.1} parent=11 // pred_fallthru
        _
      // Predicated region
      $region17: #{tpu_custom_call.1} parent=11 // pred_check
        %p225 = pneg %p95
      $region18: #{tpu_custom_call.1} parent=11 // pred_check_branch
        %227 = sbr.rel (%p225) target = $region20
      $region19: #{tpu_custom_call.1} parent=11 // pred_region
        _
      $region20: #{tpu_custom_call.1} parent=11 // pred_fallthru
        _
      // Predicated region
      $region21: #{tpu_custom_call.1} parent=11 // pred_check
        %p228 = pneg %p116
      $region22: #{tpu_custom_call.1} parent=11 // pred_check_branch
        %230 = sbr.rel (%p228) target = $region24
      $region23: #{tpu_custom_call.1} parent=11 // pred_region
        _
      $region24: #{tpu_custom_call.1} parent=11 // pred_fallthru
        _
      // Predicated region
      $region25: #{tpu_custom_call.1} parent=11 // pred_check
        %p231 = pneg %p137
      $region26: #{tpu_custom_call.1} parent=11 // pred_check_branch
        %233 = sbr.rel (%p231) target = $region28
      $region27: #{tpu_custom_call.1} parent=11 // pred_region
        _
      $region28: #{tpu_custom_call.1} parent=11 // pred_fallthru
        _
      // Predicated region
      $region29: #{tpu_custom_call.1} parent=11 // pred_check
        %p234 = pneg %p158
      $region30: #{tpu_custom_call.1} parent=11 // pred_check_branch
        %236 = sbr.rel (%p234) target = $region32
      $region31: #{tpu_custom_call.1} parent=11 // pred_region
        _
      $region32: #{tpu_custom_call.1} parent=11 // pred_fallthru
        _
      // Predicated region
      $region33: #{tpu_custom_call.1} parent=11 // pred_check
        %p237 = pneg %p179
      $region34: #{tpu_custom_call.1} parent=11 // pred_check_branch
        %239 = sbr.rel (%p237) target = $region36
      $region35: #{tpu_custom_call.1} parent=11 // pred_region
        _
      $region36: #{tpu_custom_call.1} parent=11 // pred_fallthru
        _
    $region12: #{tpu_custom_call.1} parent=5 // pred_fallthru
      _
    %p240 = scmp.lt.s32.totalorder %s13, 2
    // Predicated region
    $region37: #{tpu_custom_call.1} parent=5 // pred_check
      %p241 = pneg %p240
    $region38: #{tpu_custom_call.1} parent=5 // pred_check_branch
      %243 = sbr.rel (%p241) target = $region40
    $region39: #{tpu_custom_call.1} parent=5 // pred_region
      // Predicated region
      $region41: #{tpu_custom_call.1} parent=39 // pred_check
        %p244 = pneg %p47
      $region42: #{tpu_custom_call.1} parent=39 // pred_check_branch
        %246 = sbr.rel (%p244) target = $region44
      $region43: #{tpu_custom_call.1} parent=39 // pred_region
        %s247 = smul.u32 3, %s21
        %p248 = scmp.lt.s32.totalorder %s20, 1
        %s249 = scalar_select %p248, %s20, 1
        %p250 = scmp.lt.s32.totalorder %s247, 2
        %s251 = scalar_select %p250, %s247, 2
        %s252 = smul.addr %s249, 96
        %s253 = sadd.s32 %s251, %s252
        %s254 = smul.addr %s253, 8
        %s255 = scalar_lea.vmem %s0, %s254
        %s256 = smul.u32 3, %s21
      $region44: #{tpu_custom_call.1} parent=39 // pred_fallthru
        _
    $region40: #{tpu_custom_call.1} parent=5 // pred_fallthru
      _
    %p257 = scmp.le.s32.totalorder 1, %s13
    %p258 = scmp.lt.s32.totalorder %s13, 3
    %p259 = pnand %p257, %p258
    %p260 = pneg %p259
    // Predicated region
    $region45: #{tpu_custom_call.1} parent=5 // pred_check
      _
    $region46: #{tpu_custom_call.1} parent=5 // pred_check_branch
      %262 = sbr.rel (%p259) target = $region48
    $region47: #{tpu_custom_call.1} parent=5 // pred_region
      %s263 = ssub.s32 %s13, 1
      %s264 = smul.u32 3, %s23
      %p265 = scmp.lt.s32.totalorder %s22, 1
      %s266 = scalar_select %p265, %s22, 1
      %p267 = scmp.lt.s32.totalorder %s264, 2
      %s268 = scalar_select %p267, %s264, 2
      %s269 = smul.addr %s266, 96
      %s270 = sadd.s32 %s268, %s269
      %s271 = smul.addr %s270, 8
      %s272 = scalar_lea.vmem %s0, %s271
      %p273 = pneg %p53
      %p274 = pneg %p50
      %p275 = pneg %p74
      %p276 = pneg %p71
      %p277 = pneg %p95
      %p278 = pneg %p92
      %p279 = pneg %p116
      %p280 = pneg %p113
      %p281 = pneg %p137
      %p282 = pneg %p134
      %p283 = pneg %p158
      %p284 = pneg %p155
      %p285 = pneg %p179
      %p286 = pneg %p176
      %p287 = pneg %p207
      %p288 = pneg %p204
      %s289 = smul.u32 3, %s23
      %p290 = scmp.lt.s32.totalorder %s22, 1
      %s291 = scalar_select %p290, %s22, 1
      %p292 = scmp.lt.s32.totalorder %s289, 2
      %s293 = scalar_select %p292, %s289, 2
      %s294 = smul.addr %s291, 15
      %s295 = sadd.s32 %s293, %s294
      %s296 = smul.addr %s295, 8
      %s297 = scalar_lea.vmem %s7, %s296
      %s298 = smul.u32 3, %s23
      %p299 = scmp.lt.s32.totalorder %s22, 1
      %s300 = scalar_select %p299, %s22, 1
      %p301 = scmp.lt.s32.totalorder %s298, 2
      %s302 = scalar_select %p301, %s298, 2
      %s303 = smul.addr %s300, 96
      %s304 = sadd.s32 %s302, %s303
      %s305 = smul.addr %s304, 8
      %s306 = scalar_lea.vmem %s0, %s305
      %s307 = smul.u32 3, %s23
      %s308 = smul.u32 3, %s23
      %p309 = scmp.lt.s32.totalorder %s22, 1
      %s310 = scalar_select %p309, %s22, 1
      %p311 = scmp.lt.s32.totalorder %s308, 2
      %s312 = scalar_select %p311, %s308, 2
      %s313 = smul.addr %s310, 15
      %s314 = sadd.s32 %s312, %s313
      %s315 = smul.addr %s314, 8
      %s316 = scalar_lea.vmem %s7, %s315
      %s317 = smul.u32 3, %s23
      %v319 = vld [vmem:[%s306] sm:$0xff]
      %v320 = vld [vmem:[%s306 + $0x8] sm:$0xff]
      %v321 = vld [vmem:[%s306 + $0x10] sm:$0xff]
      %v322 = vld [vmem:[%s306 + $0x18] sm:$0xff]
      %v323 = vld [vmem:[%s306 + $0x20] sm:$0xff]
      %v324 = vld [vmem:[%s306 + $0x28] sm:$0xff]
      %v325 = vld [vmem:[%s306 + $0x30] sm:$0xff]
      %v326 = vld [vmem:[%s306 + $0x38] sm:$0xff]
      %v327 = vld [vmem:[%s306 + $0x40] sm:$0xff]
      %v328 = vld [vmem:[%s306 + $0x48] sm:$0xff]
      %v329 = vld [vmem:[%s306 + $0x50] sm:$0xff]
      %v330 = vld [vmem:[%s306 + $0x58] sm:$0xff]
      %v331 = vld [vmem:[%s306 + $0x60] sm:$0xff]
      %v332 = vld [vmem:[%s306 + $0x68] sm:$0xff]
      %v333 = vld [vmem:[%s306 + $0x70] sm:$0xff]
      %v334 = vld [vmem:[%s306 + $0x78] sm:$0xff]
      %v335 = vld [vmem:[%s306 + $0x80] sm:$0xff]
      %v336 = vld [vmem:[%s306 + $0x88] sm:$0xff]
      %v337 = vld [vmem:[%s306 + $0x90] sm:$0xff]
      %v338 = vld [vmem:[%s306 + $0x98] sm:$0xff]
      %v339 = vld [vmem:[%s306 + $0xa0] sm:$0xff]
      %v340 = vld [vmem:[%s306 + $0xa8] sm:$0xff]
      %v341 = vld [vmem:[%s306 + $0xb0] sm:$0xff]
      %v342 = vld [vmem:[%s306 + $0xb8] sm:$0xff]
      %v343 = vld [vmem:[%s306 + $0xc0] sm:$0xff]
      %v344 = vld [vmem:[%s306 + $0xc8] sm:$0xff]
      %v345 = vld [vmem:[%s306 + $0xd0] sm:$0xff]
      %v346 = vld [vmem:[%s306 + $0xd8] sm:$0xff]
      %v347 = vld [vmem:[%s306 + $0xe0] sm:$0xff]
      %v348 = vld [vmem:[%s306 + $0xe8] sm:$0xff]
      %v349 = vld [vmem:[%s306 + $0xf0] sm:$0xff]
      %v350 = vld [vmem:[%s306 + $0xf8] sm:$0xff]
      %v351 = vld [vmem:[%s306 + $0x100] sm:$0xff]
      %v352 = vld [vmem:[%s306 + $0x108] sm:$0xff]
      %v353 = vld [vmem:[%s306 + $0x110] sm:$0xff]
      %v354 = vld [vmem:[%s306 + $0x118] sm:$0xff]
      %v355 = vld [vmem:[%s306 + $0x120] sm:$0xff]
      %v356 = vld [vmem:[%s306 + $0x128] sm:$0xff]
      %v357 = vld [vmem:[%s306 + $0x130] sm:$0xff]
      %v358 = vld [vmem:[%s306 + $0x138] sm:$0xff]
      %v359 = vld [vmem:[%s306 + $0x140] sm:$0xff]
      %v360 = vld [vmem:[%s306 + $0x148] sm:$0xff]
      %v361 = vld [vmem:[%s306 + $0x150] sm:$0xff]
      %v362 = vld [vmem:[%s306 + $0x158] sm:$0xff]
      %v363 = vld [vmem:[%s306 + $0x160] sm:$0xff]
      %v364 = vld [vmem:[%s306 + $0x168] sm:$0xff]
      %v365 = vld [vmem:[%s306 + $0x170] sm:$0xff]
      %v366 = vld [vmem:[%s306 + $0x178] sm:$0xff]
      %v367 = vld [vmem:[%s306 + $0x180] sm:$0xff]
      %v368 = vld [vmem:[%s306 + $0x188] sm:$0xff]
      %v369 = vld [vmem:[%s306 + $0x190] sm:$0xff]
      %v370 = vld [vmem:[%s306 + $0x198] sm:$0xff]
      %v371 = vld [vmem:[%s306 + $0x1a0] sm:$0xff]
      %v372 = vld [vmem:[%s306 + $0x1a8] sm:$0xff]
      %v373 = vld [vmem:[%s306 + $0x1b0] sm:$0xff]
      %v374 = vld [vmem:[%s306 + $0x1b8] sm:$0xff]
      %v375 = vld [vmem:[%s306 + $0x1c0] sm:$0xff]
      %v376 = vld [vmem:[%s306 + $0x1c8] sm:$0xff]
      %v377 = vld [vmem:[%s306 + $0x1d0] sm:$0xff]
      %v378 = vld [vmem:[%s306 + $0x1d8] sm:$0xff]
      %v379 = vld [vmem:[%s306 + $0x1e0] sm:$0xff]
      %v380 = vld [vmem:[%s306 + $0x1e8] sm:$0xff]
      %v381 = vld [vmem:[%s306 + $0x1f0] sm:$0xff]
      %v382 = vld [vmem:[%s306 + $0x1f8] sm:$0xff]
      %v383 = vld [vmem:[%s306 + $0x200] sm:$0xff]
      %v384 = vld [vmem:[%s306 + $0x208] sm:$0xff]
      %v385 = vld [vmem:[%s306 + $0x210] sm:$0xff]
      %v386 = vld [vmem:[%s306 + $0x218] sm:$0xff]
      %v387 = vld [vmem:[%s306 + $0x220] sm:$0xff]
      %v388 = vld [vmem:[%s306 + $0x228] sm:$0xff]
      %v389 = vld [vmem:[%s306 + $0x230] sm:$0xff]
      %v390 = vld [vmem:[%s306 + $0x238] sm:$0xff]
      %v391 = vld [vmem:[%s306 + $0x240] sm:$0xff]
      %v392 = vld [vmem:[%s306 + $0x248] sm:$0xff]
      %v393 = vld [vmem:[%s306 + $0x250] sm:$0xff]
      %v394 = vld [vmem:[%s306 + $0x258] sm:$0xff]
      %v395 = vld [vmem:[%s306 + $0x260] sm:$0xff]
      %v396 = vld [vmem:[%s306 + $0x268] sm:$0xff]
      %v397 = vld [vmem:[%s306 + $0x270] sm:$0xff]
      %v398 = vld [vmem:[%s306 + $0x278] sm:$0xff]
      %v399 = vld [vmem:[%s306 + $0x280] sm:$0xff]
      %v400 = vld [vmem:[%s306 + $0x288] sm:$0xff]
      %v401 = vld [vmem:[%s306 + $0x290] sm:$0xff]
      %v402 = vld [vmem:[%s306 + $0x298] sm:$0xff]
      %v403 = vld [vmem:[%s306 + $0x2a0] sm:$0xff]
      %v404 = vld [vmem:[%s306 + $0x2a8] sm:$0xff]
      %v405 = vld [vmem:[%s306 + $0x2b0] sm:$0xff]
      %v406 = vld [vmem:[%s306 + $0x2b8] sm:$0xff]
      %v407 = vld [vmem:[%s306 + $0x2c0] sm:$0xff]
      %v408 = vld [vmem:[%s306 + $0x2c8] sm:$0xff]
      %v409 = vld [vmem:[%s306 + $0x2d0] sm:$0xff]
      %v410 = vld [vmem:[%s306 + $0x2d8] sm:$0xff]
      %v411 = vld [vmem:[%s306 + $0x2e0] sm:$0xff]
      %v412 = vld [vmem:[%s306 + $0x2e8] sm:$0xff]
      %v413 = vld [vmem:[%s306 + $0x2f0] sm:$0xff]
      %v414 = vld [vmem:[%s306 + $0x2f8] sm:$0xff]
      %v415 = vpack.c.bf16 %v322, %v319
      %v416 = vpack.c.bf16 %v323, %v320
      %v417 = vpack.c.bf16 %v324, %v321
      %v418 = vpack.c.bf16 %v328, %v325
      %v419 = vpack.c.bf16 %v329, %v326
      %v420 = vpack.c.bf16 %v330, %v327
      %v421 = vpack.c.bf16 %v334, %v331
      %v422 = vpack.c.bf16 %v335, %v332
      %v423 = vpack.c.bf16 %v336, %v333
      %v424 = vpack.c.bf16 %v340, %v337
      %v425 = vpack.c.bf16 %v341, %v338
      %v426 = vpack.c.bf16 %v342, %v339
      %v427 = vpack.c.bf16 %v346, %v343
      %v428 = vpack.c.bf16 %v347, %v344
      %v429 = vpack.c.bf16 %v348, %v345
      %v430 = vpack.c.bf16 %v352, %v349
      %v431 = vpack.c.bf16 %v353, %v350
      %v432 = vpack.c.bf16 %v354, %v351
      %v433 = vpack.c.bf16 %v358, %v355
      %v434 = vpack.c.bf16 %v359, %v356
      %v435 = vpack.c.bf16 %v360, %v357
      %v436 = vpack.c.bf16 %v364, %v361
      %v437 = vpack.c.bf16 %v365, %v362
      %v438 = vpack.c.bf16 %v366, %v363
      %v439 = vpack.c.bf16 %v370, %v367
      %v440 = vpack.c.bf16 %v371, %v368
      %v441 = vpack.c.bf16 %v372, %v369
      %v442 = vpack.c.bf16 %v376, %v373
      %v443 = vpack.c.bf16 %v377, %v374
      %v444 = vpack.c.bf16 %v378, %v375
      %v445 = vpack.c.bf16 %v382, %v379
      %v446 = vpack.c.bf16 %v383, %v380
      %v447 = vpack.c.bf16 %v384, %v381
      %v448 = vpack.c.bf16 %v388, %v385
      %v449 = vpack.c.bf16 %v389, %v386
      %v450 = vpack.c.bf16 %v390, %v387
      %v451 = vpack.c.bf16 %v394, %v391
      %v452 = vpack.c.bf16 %v395, %v392
      %v453 = vpack.c.bf16 %v396, %v393
      %v454 = vpack.c.bf16 %v400, %v397
      %v455 = vpack.c.bf16 %v401, %v398
      %v456 = vpack.c.bf16 %v402, %v399
      %v457 = vpack.c.bf16 %v406, %v403
      %v458 = vpack.c.bf16 %v407, %v404
      %v459 = vpack.c.bf16 %v408, %v405
      %v460 = vpack.c.bf16 %v412, %v409
      %v461 = vpack.c.bf16 %v413, %v410
      %v462 = vpack.c.bf16 %v414, %v411
      %v463 = vld [vmem:[%s1] sm:$0xff]
      %v464 = vld [vmem:[%s1 + $0x8] sm:$0xff]
      %v465 = vld [vmem:[%s1 + $0x10] sm:$0xff]
      %v466 = vld [vmem:[%s1 + $0x18] sm:$0xff]
      %v467 = vld [vmem:[%s1 + $0x20] sm:$0xff]
      %v468 = vld [vmem:[%s1 + $0x28] sm:$0xff]
      %v469 = vld [vmem:[%s1 + $0x30] sm:$0xff]
      %v470 = vld [vmem:[%s1 + $0x38] sm:$0xff]
      %v471 = vld [vmem:[%s1 + $0x40] sm:$0xff]
      %v472 = vld [vmem:[%s1 + $0x48] sm:$0xff]
      %v473 = vld [vmem:[%s1 + $0x50] sm:$0xff]
      %v474 = vld [vmem:[%s1 + $0x58] sm:$0xff]
      %v475 = vld [vmem:[%s1 + $0x60] sm:$0xff]
      %v476 = vld [vmem:[%s1 + $0x68] sm:$0xff]
      %v477 = vld [vmem:[%s1 + $0x70] sm:$0xff]
      %v478 = vld [vmem:[%s1 + $0x78] sm:$0xff]
      %v479 = vld [vmem:[%s2] sm:$0xff]
      %v480 = vld [vmem:[%s2 + $0x8] sm:$0xff]
      %v481 = vld [vmem:[%s2 + $0x10] sm:$0xff]
      %v482 = vld [vmem:[%s2 + $0x18] sm:$0xff]
      %v483 = vld [vmem:[%s2 + $0x20] sm:$0xff]
      %v484 = vld [vmem:[%s2 + $0x28] sm:$0xff]
      %v485 = vld [vmem:[%s2 + $0x30] sm:$0xff]
      %v486 = vld [vmem:[%s2 + $0x38] sm:$0xff]
      %v487 = vld [vmem:[%s2 + $0x40] sm:$0xff]
      %v488 = vld [vmem:[%s2 + $0x48] sm:$0xff]
      %v489 = vld [vmem:[%s2 + $0x50] sm:$0xff]
      %v490 = vld [vmem:[%s2 + $0x58] sm:$0xff]
      %v491 = vld [vmem:[%s2 + $0x60] sm:$0xff]
      %v492 = vld [vmem:[%s2 + $0x68] sm:$0xff]
      %v493 = vld [vmem:[%s2 + $0x70] sm:$0xff]
      %v494 = vld [vmem:[%s2 + $0x78] sm:$0xff]
      %496 = vset.pattern.permute.xlu0 0
      %497 = vperm.xlu0 %496, %v479
      %v498 = vpop.permute.xlu0 %497
      %501 = vset.pattern.permute.xlu0 0
      %502 = vperm.xlu0 %501, %v480
      %v503 = vpop.permute.xlu0 %502
      %506 = vset.pattern.permute.xlu0 0
      %507 = vperm.xlu0 %506, %v481
      %v508 = vpop.permute.xlu0 %507
      %511 = vset.pattern.permute.xlu0 0
      %512 = vperm.xlu0 %511, %v482
      %v513 = vpop.permute.xlu0 %512
      %516 = vset.pattern.permute.xlu0 0
      %517 = vperm.xlu0 %516, %v483
      %v518 = vpop.permute.xlu0 %517
      %521 = vset.pattern.permute.xlu0 0
      %522 = vperm.xlu0 %521, %v484
      %v523 = vpop.permute.xlu0 %522
      %526 = vset.pattern.permute.xlu0 0
      %527 = vperm.xlu0 %526, %v485
      %v528 = vpop.permute.xlu0 %527
      %531 = vset.pattern.permute.xlu0 0
      %532 = vperm.xlu0 %531, %v486
      %v533 = vpop.permute.xlu0 %532
      %536 = vset.pattern.permute.xlu0 0
      %537 = vperm.xlu0 %536, %v487
      %v538 = vpop.permute.xlu0 %537
      %541 = vset.pattern.permute.xlu0 0
      %542 = vperm.xlu0 %541, %v488
      %v543 = vpop.permute.xlu0 %542
      %546 = vset.pattern.permute.xlu0 0
      %547 = vperm.xlu0 %546, %v489
      %v548 = vpop.permute.xlu0 %547
      %551 = vset.pattern.permute.xlu0 0
      %552 = vperm.xlu0 %551, %v490
      %v553 = vpop.permute.xlu0 %552
      %556 = vset.pattern.permute.xlu0 0
      %557 = vperm.xlu0 %556, %v491
      %v558 = vpop.permute.xlu0 %557
      %561 = vset.pattern.permute.xlu0 0
      %562 = vperm.xlu0 %561, %v492
      %v563 = vpop.permute.xlu0 %562
      %566 = vset.pattern.permute.xlu0 0
      %567 = vperm.xlu0 %566, %v493
      %v568 = vpop.permute.xlu0 %567
      %571 = vset.pattern.permute.xlu0 0
      %572 = vperm.xlu0 %571, %v494
      %v573 = vpop.permute.xlu0 %572
      %v591 = vunpack.c.l.b16 %v463
      %v592 = vunpack.c.h.b16 %v463
      %v593 = vunpack.c.l.b16 %v464
      %v594 = vunpack.c.h.b16 %v464
      %v595 = vunpack.c.l.b16 %v465
      %v596 = vunpack.c.h.b16 %v465
      %v597 = vunpack.c.l.b16 %v466
      %v598 = vunpack.c.h.b16 %v466
      %v599 = vunpack.c.l.b16 %v467
      %v600 = vunpack.c.h.b16 %v467
      %v601 = vunpack.c.l.b16 %v468
      %v602 = vunpack.c.h.b16 %v468
      %v603 = vunpack.c.l.b16 %v469
      %v604 = vunpack.c.h.b16 %v469
      %v605 = vunpack.c.l.b16 %v470
      %v606 = vunpack.c.h.b16 %v470
      %v607 = vunpack.c.l.b16 %v471
      %v608 = vunpack.c.h.b16 %v471
      %v609 = vunpack.c.l.b16 %v472
      %v610 = vunpack.c.h.b16 %v472
      %v611 = vunpack.c.l.b16 %v473
      %v612 = vunpack.c.h.b16 %v473
      %v613 = vunpack.c.l.b16 %v474
      %v614 = vunpack.c.h.b16 %v474
      %v615 = vunpack.c.l.b16 %v475
      %v616 = vunpack.c.h.b16 %v475
      %v617 = vunpack.c.l.b16 %v476
      %v618 = vunpack.c.h.b16 %v476
      %v619 = vunpack.c.l.b16 %v477
      %v620 = vunpack.c.h.b16 %v477
      %v621 = vunpack.c.l.b16 %v478
      %v622 = vunpack.c.h.b16 %v478
      %v623 = vpack.c.b16 %v593, %v591
      %v624 = vpack.c.b16 %v594, %v592
      %v625 = vpack.c.b16 %v597, %v595
      %v626 = vpack.c.b16 %v598, %v596
      %v627 = vpack.c.b16 %v601, %v599
      %v628 = vpack.c.b16 %v602, %v600
      %v629 = vpack.c.b16 %v605, %v603
      %v630 = vpack.c.b16 %v606, %v604
      %v631 = vpack.c.b16 %v609, %v607
      %v632 = vpack.c.b16 %v610, %v608
      %v633 = vpack.c.b16 %v613, %v611
      %v634 = vpack.c.b16 %v614, %v612
      %v635 = vpack.c.b16 %v617, %v615
      %v636 = vpack.c.b16 %v618, %v616
      %v637 = vpack.c.b16 %v621, %v619
      %v638 = vpack.c.b16 %v622, %v620
      %655 = vmatprep.subr.bf16.mxu0 %v416
      %656 = vmatpush1.bf16.msra.mxu0 %v415
      %657 = vmatprep.subr.bf16.mxu0 %v419
      %658 = vmatpush1.bf16.msra.mxu0 %v418
      %659 = vmatprep.subr.bf16.mxu0 %v422
      %660 = vmatpush1.bf16.msra.mxu0 %v421
      %661 = vmatprep.subr.bf16.mxu0 %v425
      %662 = vmatpush1.bf16.msra.mxu0 %v424
      %663 = vmatprep.subr.bf16.mxu0 %v428
      %664 = vmatpush1.bf16.msra.mxu0 %v427
      %665 = vmatprep.subr.bf16.mxu0 %v431
      %666 = vmatpush1.bf16.msra.mxu0 %v430
      %667 = vmatprep.subr.bf16.mxu0 %v434
      %668 = vmatpush1.bf16.msra.mxu0 %v433
      %669 = vmatprep.subr.bf16.mxu0 %v437
      %670 = vmatpush1.bf16.msra.mxu0 %v436
      %671 = vmatprep.subr.bf16.mxu0 %v440
      %672 = vmatpush1.bf16.msra.mxu0 %v439
      %673 = vmatprep.subr.bf16.mxu0 %v443
      %674 = vmatpush1.bf16.msra.mxu0 %v442
      %675 = vmatprep.subr.bf16.mxu0 %v446
      %676 = vmatpush1.bf16.msra.mxu0 %v445
      %677 = vmatprep.subr.bf16.mxu0 %v449
      %678 = vmatpush1.bf16.msra.mxu0 %v448
      %679 = vmatprep.subr.bf16.mxu0 %v452
      %680 = vmatpush1.bf16.msra.mxu0 %v451
      %681 = vmatprep.subr.bf16.mxu0 %v455
      %682 = vmatpush1.bf16.msra.mxu0 %v454
      %683 = vmatprep.subr.bf16.mxu0 %v458
      %684 = vmatpush1.bf16.msra.mxu0 %v457
      %685 = vmatprep.subr.bf16.mxu0 %v461
      %686 = vmatpush1.bf16.msra.mxu0 %v460
      %687 = vmatprep.mubr.bf16.mxu0 %v624
      %688 = vmatmul.mubr.bf16.gmra.mrb[0].mxu0 %v623
      %v689 = vpop.f32.mrb[0].mxu0
      %v690 = vadd.f32 %v498, %v689
      %v691 = vpop.f32.mrb[0].mxu0
      %v692 = vadd.f32 %v498, %v691
      %v693 = vpop.f32.mrb[0].mxu0
      %v694 = vadd.f32 %v503, %v693
      %v695 = vpop.f32.mrb[0].mxu0
      %v696 = vadd.f32 %v503, %v695
      %697 = vmatprep.mubr.bf16.mxu0 %v626
      %698 = vmatmul.mubr.bf16.gmra.mrb[0].mxu0 %v625
      %v699 = vpop.f32.mrb[0].mxu0
      %v700 = vadd.f32 %v508, %v699
      %v701 = vpop.f32.mrb[0].mxu0
      %v702 = vadd.f32 %v508, %v701
      %v703 = vpop.f32.mrb[0].mxu0
      %v704 = vadd.f32 %v513, %v703
      %v705 = vpop.f32.mrb[0].mxu0
      %v706 = vadd.f32 %v513, %v705
      %707 = vmatprep.mubr.bf16.mxu0 %v628
      %708 = vmatmul.mubr.bf16.gmra.mrb[0].mxu0 %v627
      %v709 = vpop.f32.mrb[0].mxu0
      %v710 = vadd.f32 %v518, %v709
      %v711 = vpop.f32.mrb[0].mxu0
      %v712 = vadd.f32 %v518, %v711
      %v713 = vpop.f32.mrb[0].mxu0
      %v714 = vadd.f32 %v523, %v713
      %v715 = vpop.f32.mrb[0].mxu0
      %v716 = vadd.f32 %v523, %v715
      %717 = vmatprep.mubr.bf16.mxu0 %v630
      %718 = vmatmul.mubr.bf16.gmra.mrb[0].mxu0 %v629
      %v719 = vpop.f32.mrb[0].mxu0
      %v720 = vadd.f32 %v528, %v719
      %v721 = vpop.f32.mrb[0].mxu0
      %v722 = vadd.f32 %v528, %v721
      %v723 = vpop.f32.mrb[0].mxu0
      %v724 = vadd.f32 %v533, %v723
      %v725 = vpop.f32.mrb[0].mxu0
      %v726 = vadd.f32 %v533, %v725
      %727 = vmatprep.mubr.bf16.mxu0 %v632
      %728 = vmatmul.mubr.bf16.gmra.mrb[0].mxu0 %v631
      %v729 = vpop.f32.mrb[0].mxu0
      %v730 = vadd.f32 %v538, %v729
      %v731 = vpop.f32.mrb[0].mxu0
      %v732 = vadd.f32 %v538, %v731
      %v733 = vpop.f32.mrb[0].mxu0
      %v734 = vadd.f32 %v543, %v733
      %v735 = vpop.f32.mrb[0].mxu0
      %v736 = vadd.f32 %v543, %v735
      %737 = vmatprep.mubr.bf16.mxu0 %v634
      %738 = vmatmul.mubr.bf16.gmra.mrb[0].mxu0 %v633
      %v739 = vpop.f32.mrb[0].mxu0
      %v740 = vadd.f32 %v548, %v739
      %v741 = vpop.f32.mrb[0].mxu0
      %v742 = vadd.f32 %v548, %v741
      %v743 = vpop.f32.mrb[0].mxu0
      %v744 = vadd.f32 %v553, %v743
      %v745 = vpop.f32.mrb[0].mxu0
      %v746 = vadd.f32 %v553, %v745
      %747 = vmatprep.mubr.bf16.mxu0 %v636
      %748 = vmatmul.mubr.bf16.gmra.mrb[0].mxu0 %v635
      %v749 = vpop.f32.mrb[0].mxu0
      %v750 = vadd.f32 %v558, %v749
      %v751 = vpop.f32.mrb[0].mxu0
      %v752 = vadd.f32 %v558, %v751
      %v753 = vpop.f32.mrb[0].mxu0
      %v754 = vadd.f32 %v563, %v753
      %v755 = vpop.f32.mrb[0].mxu0
      %v756 = vadd.f32 %v563, %v755
      %757 = vmatprep.mubr.bf16.mxu0 %v638
      %758 = vmatmul.mubr.bf16.gmra.mrb[0].mxu0 %v637
      %v759 = vpop.f32.mrb[0].mxu0
      %v760 = vadd.f32 %v568, %v759
      %v761 = vpop.f32.mrb[0].mxu0
      %v762 = vadd.f32 %v568, %v761
      %v763 = vpop.f32.mrb[0].mxu0
      %v764 = vadd.f32 %v573, %v763
      %v765 = vpop.f32.mrb[0].mxu0
      %v766 = vadd.f32 %v573, %v765
      %767 = vdwg.mxu0
      %768 = vmatprep.subr.bf16.mxu0 0
      %769 = vmatpush1.bf16.msra.mxu0 %v417
      %770 = vmatprep.subr.bf16.mxu0 0
      %771 = vmatpush1.bf16.msra.mxu0 %v420
      %772 = vmatprep.subr.bf16.mxu0 0
      %773 = vmatpush1.bf16.msra.mxu0 %v423
      %774 = vmatprep.subr.bf16.mxu0 0
      %775 = vmatpush1.bf16.msra.mxu0 %v426
      %776 = vmatprep.subr.bf16.mxu0 0
      %777 = vmatpush1.bf16.msra.mxu0 %v429
      %778 = vmatprep.subr.bf16.mxu0 0
      %779 = vmatpush1.bf16.msra.mxu0 %v432
      %780 = vmatprep.subr.bf16.mxu0 0
      %781 = vmatpush1.bf16.msra.mxu0 %v435
      %782 = vmatprep.subr.bf16.mxu0 0
      %783 = vmatpush1.bf16.msra.mxu0 %v438
      %784 = vmatprep.subr.bf16.mxu0 0
      %785 = vmatpush1.bf16.msra.mxu0 %v441
      %786 = vmatprep.subr.bf16.mxu0 0
      %787 = vmatpush1.bf16.msra.mxu0 %v444
      %788 = vmatprep.subr.bf16.mxu0 0
      %789 = vmatpush1.bf16.msra.mxu0 %v447
      %790 = vmatprep.subr.bf16.mxu0 0
      %791 = vmatpush1.bf16.msra.mxu0 %v450
      %792 = vmatprep.subr.bf16.mxu0 0
      %793 = vmatpush1.bf16.msra.mxu0 %v453
      %794 = vmatprep.subr.bf16.mxu0 0
      %795 = vmatpush1.bf16.msra.mxu0 %v456
      %796 = vmatprep.subr.bf16.mxu0 0
      %797 = vmatpush1.bf16.msra.mxu0 %v459
      %798 = vmatprep.subr.bf16.mxu0 0
      %799 = vmatpush1.bf16.msra.mxu0 %v462
      %800 = vmatprep.mubr.bf16.mxu0 %v624
      %801 = vmatmul.mubr.bf16.gmra.mrb[0].mxu0 %v623
      %v802 = vpop.f32.mrb[0].mxu0
      %v803 = vadd.f32 %v498, %v802
      %v804 = vpop.f32.mrb[0].mxu0
      %v805 = vpop.f32.mrb[0].mxu0
      %v806 = vadd.f32 %v503, %v805
      %v807 = vpop.f32.mrb[0].mxu0
      %808 = vmatprep.mubr.bf16.mxu0 %v626
      %809 = vmatmul.mubr.bf16.gmra.mrb[0].mxu0 %v625
      %v810 = vpop.f32.mrb[0].mxu0
      %v811 = vadd.f32 %v508, %v810
      %v812 = vpop.f32.mrb[0].mxu0
      %v813 = vpop.f32.mrb[0].mxu0
      %v814 = vadd.f32 %v513, %v813
      %v815 = vpop.f32.mrb[0].mxu0
      %816 = vmatprep.mubr.bf16.mxu0 %v628
      %817 = vmatmul.mubr.bf16.gmra.mrb[0].mxu0 %v627
      %v818 = vpop.f32.mrb[0].mxu0
      %v819 = vadd.f32 %v518, %v818
      %v820 = vpop.f32.mrb[0].mxu0
      %v821 = vpop.f32.mrb[0].mxu0
      %v822 = vadd.f32 %v523, %v821
      %v823 = vpop.f32.mrb[0].mxu0
      %824 = vmatprep.mubr.bf16.mxu0 %v630
      %825 = vmatmul.mubr.bf16.gmra.mrb[0].mxu0 %v629
      %v826 = vpop.f32.mrb[0].mxu0
      %v827 = vadd.f32 %v528, %v826
      %v828 = vpop.f32.mrb[0].mxu0
      %v829 = vpop.f32.mrb[0].mxu0
      %v830 = vadd.f32 %v533, %v829
      %v831 = vpop.f32.mrb[0].mxu0
      %832 = vmatprep.mubr.bf16.mxu0 %v632
      %833 = vmatmul.mubr.bf16.gmra.mrb[0].mxu0 %v631
      %v834 = vpop.f32.mrb[0].mxu0
      %v835 = vadd.f32 %v538, %v834
      %v836 = vpop.f32.mrb[0].mxu0
      %v837 = vpop.f32.mrb[0].mxu0
      %v838 = vadd.f32 %v543, %v837
      %v839 = vpop.f32.mrb[0].mxu0
      %840 = vmatprep.mubr.bf16.mxu0 %v634
      %841 = vmatmul.mubr.bf16.gmra.mrb[0].mxu0 %v633
      %v842 = vpop.f32.mrb[0].mxu0
      %v843 = vadd.f32 %v548, %v842
      %v844 = vpop.f32.mrb[0].mxu0
      %v845 = vpop.f32.mrb[0].mxu0
      %v846 = vadd.f32 %v553, %v845
      %v847 = vpop.f32.mrb[0].mxu0
      %848 = vmatprep.mubr.bf16.mxu0 %v636
      %849 = vmatmul.mubr.bf16.gmra.mrb[0].mxu0 %v635
      %v850 = vpop.f32.mrb[0].mxu0
      %v851 = vadd.f32 %v558, %v850
      %v852 = vpop.f32.mrb[0].mxu0
      %v853 = vpop.f32.mrb[0].mxu0
      %v854 = vadd.f32 %v563, %v853
      %v855 = vpop.f32.mrb[0].mxu0
      %856 = vmatprep.mubr.bf16.mxu0 %v638
      %857 = vmatmul.mubr.bf16.gmra.mrb[0].mxu0 %v637
      %v858 = vpop.f32.mrb[0].mxu0
      %v859 = vadd.f32 %v568, %v858
      %v860 = vpop.f32.mrb[0].mxu0
      %v861 = vpop.f32.mrb[0].mxu0
      %v862 = vadd.f32 %v573, %v861
      %v863 = vpop.f32.mrb[0].mxu0
      %864 = vdwg.mxu0
      %v865 = vmax.f32 %v690, 0.0
      %v866 = vmax.f32 %v692, 0.0
      %v867 = vmax.f32 %v803, 0.0
      %v868 = vmax.f32 %v694, 0.0
      %v869 = vmax.f32 %v696, 0.0
      %v870 = vmax.f32 %v806, 0.0
      %v871 = vmax.f32 %v700, 0.0
      %v872 = vmax.f32 %v702, 0.0
      %v873 = vmax.f32 %v811, 0.0
      %v874 = vmax.f32 %v704, 0.0
      %v875 = vmax.f32 %v706, 0.0
      %v876 = vmax.f32 %v814, 0.0
      %v877 = vmax.f32 %v710, 0.0
      %v878 = vmax.f32 %v712, 0.0
      %v879 = vmax.f32 %v819, 0.0
      %v880 = vmax.f32 %v714, 0.0
      %v881 = vmax.f32 %v716, 0.0
      %v882 = vmax.f32 %v822, 0.0
      %v883 = vmax.f32 %v720, 0.0
      %v884 = vmax.f32 %v722, 0.0
      %v885 = vmax.f32 %v827, 0.0
      %v886 = vmax.f32 %v724, 0.0
      %v887 = vmax.f32 %v726, 0.0
      %v888 = vmax.f32 %v830, 0.0
      %v889 = vmax.f32 %v730, 0.0
      %v890 = vmax.f32 %v732, 0.0
      %v891 = vmax.f32 %v835, 0.0
      %v892 = vmax.f32 %v734, 0.0
      %v893 = vmax.f32 %v736, 0.0
      %v894 = vmax.f32 %v838, 0.0
      %v895 = vmax.f32 %v740, 0.0
      %v896 = vmax.f32 %v742, 0.0
      %v897 = vmax.f32 %v843, 0.0
      %v898 = vmax.f32 %v744, 0.0
      %v899 = vmax.f32 %v746, 0.0
      %v900 = vmax.f32 %v846, 0.0
      %v901 = vmax.f32 %v750, 0.0
      %v902 = vmax.f32 %v752, 0.0
      %v903 = vmax.f32 %v851, 0.0
      %v904 = vmax.f32 %v754, 0.0
      %v905 = vmax.f32 %v756, 0.0
      %v906 = vmax.f32 %v854, 0.0
      %v907 = vmax.f32 %v760, 0.0
      %v908 = vmax.f32 %v762, 0.0
      %v909 = vmax.f32 %v859, 0.0
      %v910 = vmax.f32 %v764, 0.0
      %v911 = vmax.f32 %v766, 0.0
      %v912 = vmax.f32 %v862, 0.0
      %v913 = vld [vmem:[%s3] sm:$0xf]
      %v914 = vld [vmem:[%s3 + $0x4] sm:$0xf]
      %v915 = vld [vmem:[%s3 + $0x8] sm:$0xf]
      %v916 = vld [vmem:[%s3 + $0xc] sm:$0xf]
      %v917 = vld [vmem:[%s3 + $0x10] sm:$0xf]
      %v918 = vld [vmem:[%s3 + $0x14] sm:$0xf]
      %v919 = vld [vmem:[%s3 + $0x18] sm:$0xf]
      %v920 = vld [vmem:[%s3 + $0x1c] sm:$0xf]
      %v921 = vld [vmem:[%s3 + $0x20] sm:$0xf]
      %v922 = vld [vmem:[%s3 + $0x24] sm:$0xf]
      %v923 = vld [vmem:[%s3 + $0x28] sm:$0xf]
      %v924 = vld [vmem:[%s3 + $0x2c] sm:$0xf]
      %v925 = vld [vmem:[%s3 + $0x30] sm:$0xf]
      %v926 = vld [vmem:[%s3 + $0x34] sm:$0xf]
      %v927 = vld [vmem:[%s3 + $0x38] sm:$0xf]
      %v928 = vld [vmem:[%s3 + $0x3c] sm:$0xf]
      %v929 = vpack.c.bf16 %v868, %v865
      %v930 = vpack.c.bf16 %v869, %v866
      %v931 = vpack.c.bf16 %v870, %v867
      %v932 = vpack.c.bf16 %v874, %v871
      %v933 = vpack.c.bf16 %v875, %v872
      %v934 = vpack.c.bf16 %v876, %v873
      %v935 = vpack.c.bf16 %v880, %v877
      %v936 = vpack.c.bf16 %v881, %v878
      %v937 = vpack.c.bf16 %v882, %v879
      %v938 = vpack.c.bf16 %v886, %v883
      %v939 = vpack.c.bf16 %v887, %v884
      %v940 = vpack.c.bf16 %v888, %v885
      %v941 = vpack.c.bf16 %v892, %v889
      %v942 = vpack.c.bf16 %v893, %v890
      %v943 = vpack.c.bf16 %v894, %v891
      %v944 = vpack.c.bf16 %v898, %v895
      %v945 = vpack.c.bf16 %v899, %v896
      %v946 = vpack.c.bf16 %v900, %v897
      %v947 = vpack.c.bf16 %v904, %v901
      %v948 = vpack.c.bf16 %v905, %v902
      %v949 = vpack.c.bf16 %v906, %v903
      %v950 = vpack.c.bf16 %v910, %v907
      %v951 = vpack.c.bf16 %v911, %v908
      %v952 = vpack.c.bf16 %v912, %v909
      %v953 = vld [vmem:[%s4] sm:$0xff]
      %v954 = vld [vmem:[%s4 + $0x8] sm:$0xff]
      %v955 = vld [vmem:[%s4 + $0x10] sm:$0xff]
      %v956 = vld [vmem:[%s4 + $0x18] sm:$0xff]
      %v957 = vld [vmem:[%s4 + $0x20] sm:$0xff]
      %v958 = vld [vmem:[%s4 + $0x28] sm:$0xff]
      %v959 = vld [vmem:[%s4 + $0x30] sm:$0xff]
      %v960 = vld [vmem:[%s4 + $0x38] sm:$0xff]
      %v961 = vld [vmem:[%s4 + $0x40] sm:$0xff]
      %v962 = vld [vmem:[%s4 + $0x48] sm:$0xff]
      %v963 = vld [vmem:[%s4 + $0x50] sm:$0xff]
      %v964 = vld [vmem:[%s4 + $0x58] sm:$0xff]
      %v965 = vld [vmem:[%s4 + $0x60] sm:$0xff]
      %v966 = vld [vmem:[%s4 + $0x68] sm:$0xff]
      %v967 = vld [vmem:[%s4 + $0x70] sm:$0xff]
      %v968 = vld [vmem:[%s4 + $0x78] sm:$0xff]
      %970 = vset.pattern.permute.xlu0 0
      %971 = vperm.xlu0 %970, %v953
      %v972 = vpop.permute.xlu0 %971
      %975 = vset.pattern.permute.xlu0 0
      %976 = vperm.xlu0 %975, %v954
      %v977 = vpop.permute.xlu0 %976
      %980 = vset.pattern.permute.xlu0 0
      %981 = vperm.xlu0 %980, %v955
      %v982 = vpop.permute.xlu0 %981
      %985 = vset.pattern.permute.xlu0 0
      %986 = vperm.xlu0 %985, %v956
      %v987 = vpop.permute.xlu0 %986
      %990 = vset.pattern.permute.xlu0 0
      %991 = vperm.xlu0 %990, %v957
      %v992 = vpop.permute.xlu0 %991
      %995 = vset.pattern.permute.xlu0 0
      %996 = vperm.xlu0 %995, %v958
      %v997 = vpop.permute.xlu0 %996
      %1000 = vset.pattern.permute.xlu0 0
      %1001 = vperm.xlu0 %1000, %v959
      %v1002 = vpop.permute.xlu0 %1001
      %1005 = vset.pattern.permute.xlu0 0
      %1006 = vperm.xlu0 %1005, %v960
      %v1007 = vpop.permute.xlu0 %1006
      %1010 = vset.pattern.permute.xlu0 0
      %1011 = vperm.xlu0 %1010, %v961
      %v1012 = vpop.permute.xlu0 %1011
      %1015 = vset.pattern.permute.xlu0 0
      %1016 = vperm.xlu0 %1015, %v962
      %v1017 = vpop.permute.xlu0 %1016
      %1020 = vset.pattern.permute.xlu0 0
      %1021 = vperm.xlu0 %1020, %v963
      %v1022 = vpop.permute.xlu0 %1021
      %1025 = vset.pattern.permute.xlu0 0
      %1026 = vperm.xlu0 %1025, %v964
      %v1027 = vpop.permute.xlu0 %1026
      %1030 = vset.pattern.permute.xlu0 0
      %1031 = vperm.xlu0 %1030, %v965
      %v1032 = vpop.permute.xlu0 %1031
      %1035 = vset.pattern.permute.xlu0 0
      %1036 = vperm.xlu0 %1035, %v966
      %v1037 = vpop.permute.xlu0 %1036
      %1040 = vset.pattern.permute.xlu0 0
      %1041 = vperm.xlu0 %1040, %v967
      %v1042 = vpop.permute.xlu0 %1041
      %1045 = vset.pattern.permute.xlu0 0
      %1046 = vperm.xlu0 %1045, %v968
      %v1047 = vpop.permute.xlu0 %1046
      %v1065 = vunpack.c.l.b16 %v913
      %v1066 = vunpack.c.l.b16 %v914
      %v1067 = vunpack.c.l.b16 %v915
      %v1068 = vunpack.c.l.b16 %v916
      %v1069 = vunpack.c.l.b16 %v917
      %v1070 = vunpack.c.l.b16 %v918
      %v1071 = vunpack.c.l.b16 %v919
      %v1072 = vunpack.c.l.b16 %v920
      %v1073 = vunpack.c.l.b16 %v921
      %v1074 = vunpack.c.l.b16 %v922
      %v1075 = vunpack.c.l.b16 %v923
      %v1076 = vunpack.c.l.b16 %v924
      %v1077 = vunpack.c.l.b16 %v925
      %v1078 = vunpack.c.l.b16 %v926
      %v1079 = vunpack.c.l.b16 %v927
      %v1080 = vunpack.c.l.b16 %v928
      %v1081 = vpack.c.b16 %v1066, %v1065
      %v1082 = vpack.c.b16 %v1068, %v1067
      %v1083 = vpack.c.b16 %v1070, %v1069
      %v1084 = vpack.c.b16 %v1072, %v1071
      %v1085 = vpack.c.b16 %v1074, %v1073
      %v1086 = vpack.c.b16 %v1076, %v1075
      %v1087 = vpack.c.b16 %v1078, %v1077
      %v1088 = vpack.c.b16 %v1080, %v1079
      %1097 = vmatprep.subr.bf16.mxu0 %v930
      %1098 = vmatpush1.bf16.msra.mxu0 %v929
      %1099 = vmatprep.subr.bf16.mxu0 %v933
      %1100 = vmatpush1.bf16.msra.mxu0 %v932
      %1101 = vmatprep.subr.bf16.mxu0 %v936
      %1102 = vmatpush1.bf16.msra.mxu0 %v935
      %1103 = vmatprep.subr.bf16.mxu0 %v939
      %1104 = vmatpush1.bf16.msra.mxu0 %v938
      %1105 = vmatprep.subr.bf16.mxu0 %v942
      %1106 = vmatpush1.bf16.msra.mxu0 %v941
      %1107 = vmatprep.subr.bf16.mxu0 %v945
      %1108 = vmatpush1.bf16.msra.mxu0 %v944
      %1109 = vmatprep.subr.bf16.mxu0 %v948
      %1110 = vmatpush1.bf16.msra.mxu0 %v947
      %1111 = vmatprep.subr.bf16.mxu0 %v951
      %1112 = vmatpush1.bf16.msra.mxu0 %v950
      %1113 = vmatprep.subr.bf16.mxu0 0
      %1114 = vmatpush1.bf16.msra.mxu0 0
      %1115 = vmatprep.subr.bf16.mxu0 0
      %1116 = vmatpush1.bf16.msra.mxu0 0
      %1117 = vmatprep.subr.bf16.mxu0 0
      %1118 = vmatpush1.bf16.msra.mxu0 0
      %1119 = vmatprep.subr.bf16.mxu0 0
      %1120 = vmatpush1.bf16.msra.mxu0 0
      %1121 = vmatprep.subr.bf16.mxu0 0
      %1122 = vmatpush1.bf16.msra.mxu0 0
      %1123 = vmatprep.subr.bf16.mxu0 0
      %1124 = vmatpush1.bf16.msra.mxu0 0
      %1125 = vmatprep.subr.bf16.mxu0 0
      %1126 = vmatpush1.bf16.msra.mxu0 0
      %1127 = vmatprep.subr.bf16.mxu0 0
      %1128 = vmatpush1.bf16.msra.mxu0 0
      %1129 = vmatprep.mubr.bf16.mxu0 0
      %1130 = vmatmul.mubr.bf16.gmra.mrb[0].mxu0 %v1081
      %v1131 = vpop.f32.mrb[0].mxu0
      %v1132 = vadd.f32 %v972, %v1131
      %v1133 = vpop.f32.mrb[0].mxu0
      %v1134 = vadd.f32 %v972, %v1133
      %v1135 = vpop.f32.mrb[0].mxu0
      %v1136 = vadd.f32 %v977, %v1135
      %v1137 = vpop.f32.mrb[0].mxu0
      %v1138 = vadd.f32 %v977, %v1137
      %1139 = vmatprep.mubr.bf16.mxu0 0
      %1140 = vmatmul.mubr.bf16.gmra.mrb[0].mxu0 %v1082
      %v1141 = vpop.f32.mrb[0].mxu0
      %v1142 = vadd.f32 %v982, %v1141
      %v1143 = vpop.f32.mrb[0].mxu0
      %v1144 = vadd.f32 %v982, %v1143
      %v1145 = vpop.f32.mrb[0].mxu0
      %v1146 = vadd.f32 %v987, %v1145
      %v1147 = vpop.f32.mrb[0].mxu0
      %v1148 = vadd.f32 %v987, %v1147
      %1149 = vmatprep.mubr.bf16.mxu0 0
      %1150 = vmatmul.mubr.bf16.gmra.mrb[0].mxu0 %v1083
      %v1151 = vpop.f32.mrb[0].mxu0
      %v1152 = vadd.f32 %v992, %v1151
      %v1153 = vpop.f32.mrb[0].mxu0
      %v1154 = vadd.f32 %v992, %v1153
      %v1155 = vpop.f32.mrb[0].mxu0
      %v1156 = vadd.f32 %v997, %v1155
      %v1157 = vpop.f32.mrb[0].mxu0
      %v1158 = vadd.f32 %v997, %v1157
      %1159 = vmatprep.mubr.bf16.mxu0 0
      %1160 = vmatmul.mubr.bf16.gmra.mrb[0].mxu0 %v1084
      %v1161 = vpop.f32.mrb[0].mxu0
      %v1162 = vadd.f32 %v1002, %v1161
      %v1163 = vpop.f32.mrb[0].mxu0
      %v1164 = vadd.f32 %v1002, %v1163
      %v1165 = vpop.f32.mrb[0].mxu0
      %v1166 = vadd.f32 %v1007, %v1165
      %v1167 = vpop.f32.mrb[0].mxu0
      %v1168 = vadd.f32 %v1007, %v1167
      %1169 = vmatprep.mubr.bf16.mxu0 0
      %1170 = vmatmul.mubr.bf16.gmra.mrb[0].mxu0 %v1085
      %v1171 = vpop.f32.mrb[0].mxu0
      %v1172 = vadd.f32 %v1012, %v1171
      %v1173 = vpop.f32.mrb[0].mxu0
      %v1174 = vadd.f32 %v1012, %v1173
      %v1175 = vpop.f32.mrb[0].mxu0
      %v1176 = vadd.f32 %v1017, %v1175
      %v1177 = vpop.f32.mrb[0].mxu0
      %v1178 = vadd.f32 %v1017, %v1177
      %1179 = vmatprep.mubr.bf16.mxu0 0
      %1180 = vmatmul.mubr.bf16.gmra.mrb[0].mxu0 %v1086
      %v1181 = vpop.f32.mrb[0].mxu0
      %v1182 = vadd.f32 %v1022, %v1181
      %v1183 = vpop.f32.mrb[0].mxu0
      %v1184 = vadd.f32 %v1022, %v1183
      %v1185 = vpop.f32.mrb[0].mxu0
      %v1186 = vadd.f32 %v1027, %v1185
      %v1187 = vpop.f32.mrb[0].mxu0
      %v1188 = vadd.f32 %v1027, %v1187
      %1189 = vmatprep.mubr.bf16.mxu0 0
      %1190 = vmatmul.mubr.bf16.gmra.mrb[0].mxu0 %v1087
      %v1191 = vpop.f32.mrb[0].mxu0
      %v1192 = vadd.f32 %v1032, %v1191
      %v1193 = vpop.f32.mrb[0].mxu0
      %v1194 = vadd.f32 %v1032, %v1193
      %v1195 = vpop.f32.mrb[0].mxu0
      %v1196 = vadd.f32 %v1037, %v1195
      %v1197 = vpop.f32.mrb[0].mxu0
      %v1198 = vadd.f32 %v1037, %v1197
      %1199 = vmatprep.mubr.bf16.mxu0 0
      %1200 = vmatmul.mubr.bf16.gmra.mrb[0].mxu0 %v1088
      %v1201 = vpop.f32.mrb[0].mxu0
      %v1202 = vadd.f32 %v1042, %v1201
      %v1203 = vpop.f32.mrb[0].mxu0
      %v1204 = vadd.f32 %v1042, %v1203
      %v1205 = vpop.f32.mrb[0].mxu0
      %v1206 = vadd.f32 %v1047, %v1205
      %v1207 = vpop.f32.mrb[0].mxu0
      %v1208 = vadd.f32 %v1047, %v1207
      %1209 = vdwg.mxu0
      %1210 = vmatprep.subr.bf16.mxu0 0
      %1211 = vmatpush1.bf16.msra.mxu0 %v931
      %1212 = vmatprep.subr.bf16.mxu0 0
      %1213 = vmatpush1.bf16.msra.mxu0 %v934
      %1214 = vmatprep.subr.bf16.mxu0 0
      %1215 = vmatpush1.bf16.msra.mxu0 %v937
      %1216 = vmatprep.subr.bf16.mxu0 0
      %1217 = vmatpush1.bf16.msra.mxu0 %v940
      %1218 = vmatprep.subr.bf16.mxu0 0
      %1219 = vmatpush1.bf16.msra.mxu0 %v943
      %1220 = vmatprep.subr.bf16.mxu0 0
      %1221 = vmatpush1.bf16.msra.mxu0 %v946
      %1222 = vmatprep.subr.bf16.mxu0 0
      %1223 = vmatpush1.bf16.msra.mxu0 %v949
      %1224 = vmatprep.subr.bf16.mxu0 0
      %1225 = vmatpush1.bf16.msra.mxu0 %v952
      %1226 = vmatprep.subr.bf16.mxu0 0
      %1227 = vmatpush1.bf16.msra.mxu0 0
      %1228 = vmatprep.subr.bf16.mxu0 0
      %1229 = vmatpush1.bf16.msra.mxu0 0
      %1230 = vmatprep.subr.bf16.mxu0 0
      %1231 = vmatpush1.bf16.msra.mxu0 0
      %1232 = vmatprep.subr.bf16.mxu0 0
      %1233 = vmatpush1.bf16.msra.mxu0 0
      %1234 = vmatprep.subr.bf16.mxu0 0
      %1235 = vmatpush1.bf16.msra.mxu0 0
      %1236 = vmatprep.subr.bf16.mxu0 0
      %1237 = vmatpush1.bf16.msra.mxu0 0
      %1238 = vmatprep.subr.bf16.mxu0 0
      %1239 = vmatpush1.bf16.msra.mxu0 0
      %1240 = vmatprep.subr.bf16.mxu0 0
      %1241 = vmatpush1.bf16.msra.mxu0 0
      %1242 = vmatprep.mubr.bf16.mxu0 0
      %1243 = vmatmul.mubr.bf16.gmra.mrb[0].mxu0 %v1081
      %v1244 = vpop.f32.mrb[0].mxu0
      %v1245 = vadd.f32 %v972, %v1244
      %v1246 = vpop.f32.mrb[0].mxu0
      %v1247 = vpop.f32.mrb[0].mxu0
      %v1248 = vadd.f32 %v977, %v1247
      %v1249 = vpop.f32.mrb[0].mxu0
      %1250 = vmatprep.mubr.bf16.mxu0 0
      %1251 = vmatmul.mubr.bf16.gmra.mrb[0].mxu0 %v1082
      %v1252 = vpop.f32.mrb[0].mxu0
      %v1253 = vadd.f32 %v982, %v1252
      %v1254 = vpop.f32.mrb[0].mxu0
      %v1255 = vpop.f32.mrb[0].mxu0
      %v1256 = vadd.f32 %v987, %v1255
      %v1257 = vpop.f32.mrb[0].mxu0
      %1258 = vmatprep.mubr.bf16.mxu0 0
      %1259 = vmatmul.mubr.bf16.gmra.mrb[0].mxu0 %v1083
      %v1260 = vpop.f32.mrb[0].mxu0
      %v1261 = vadd.f32 %v992, %v1260
      %v1262 = vpop.f32.mrb[0].mxu0
      %v1263 = vpop.f32.mrb[0].mxu0
      %v1264 = vadd.f32 %v997, %v1263
      %v1265 = vpop.f32.mrb[0].mxu0
      %1266 = vmatprep.mubr.bf16.mxu0 0
      %1267 = vmatmul.mubr.bf16.gmra.mrb[0].mxu0 %v1084
      %v1268 = vpop.f32.mrb[0].mxu0
      %v1269 = vadd.f32 %v1002, %v1268
      %v1270 = vpop.f32.mrb[0].mxu0
      %v1271 = vpop.f32.mrb[0].mxu0
      %v1272 = vadd.f32 %v1007, %v1271
      %v1273 = vpop.f32.mrb[0].mxu0
      %1274 = vmatprep.mubr.bf16.mxu0 0
      %1275 = vmatmul.mubr.bf16.gmra.mrb[0].mxu0 %v1085
      %v1276 = vpop.f32.mrb[0].mxu0
      %v1277 = vadd.f32 %v1012, %v1276
      %v1278 = vpop.f32.mrb[0].mxu0
      %v1279 = vpop.f32.mrb[0].mxu0
      %v1280 = vadd.f32 %v1017, %v1279
      %v1281 = vpop.f32.mrb[0].mxu0
      %1282 = vmatprep.mubr.bf16.mxu0 0
      %1283 = vmatmul.mubr.bf16.gmra.mrb[0].mxu0 %v1086
      %v1284 = vpop.f32.mrb[0].mxu0
      %v1285 = vadd.f32 %v1022, %v1284
      %v1286 = vpop.f32.mrb[0].mxu0
      %v1287 = vpop.f32.mrb[0].mxu0
      %v1288 = vadd.f32 %v1027, %v1287
      %v1289 = vpop.f32.mrb[0].mxu0
      %1290 = vmatprep.mubr.bf16.mxu0 0
      %1291 = vmatmul.mubr.bf16.gmra.mrb[0].mxu0 %v1087
      %v1292 = vpop.f32.mrb[0].mxu0
      %v1293 = vadd.f32 %v1032, %v1292
      %v1294 = vpop.f32.mrb[0].mxu0
      %v1295 = vpop.f32.mrb[0].mxu0
      %v1296 = vadd.f32 %v1037, %v1295
      %v1297 = vpop.f32.mrb[0].mxu0
      %1298 = vmatprep.mubr.bf16.mxu0 0
      %1299 = vmatmul.mubr.bf16.gmra.mrb[0].mxu0 %v1088
      %v1300 = vpop.f32.mrb[0].mxu0
      %v1301 = vadd.f32 %v1042, %v1300
      %v1302 = vpop.f32.mrb[0].mxu0
      %v1303 = vpop.f32.mrb[0].mxu0
      %v1304 = vadd.f32 %v1047, %v1303
      %v1305 = vpop.f32.mrb[0].mxu0
      %1306 = vdwg.mxu0
      %v1307 = vmax.f32 %v1132, 0.0
      %v1308 = vmax.f32 %v1134, 0.0
      %v1309 = vmax.f32 %v1245, 0.0
      %v1310 = vmax.f32 %v1136, 0.0
      %v1311 = vmax.f32 %v1138, 0.0
      %v1312 = vmax.f32 %v1248, 0.0
      %v1313 = vmax.f32 %v1142, 0.0
      %v1314 = vmax.f32 %v1144, 0.0
      %v1315 = vmax.f32 %v1253, 0.0
      %v1316 = vmax.f32 %v1146, 0.0
      %v1317 = vmax.f32 %v1148, 0.0
      %v1318 = vmax.f32 %v1256, 0.0
      %v1319 = vmax.f32 %v1152, 0.0
      %v1320 = vmax.f32 %v1154, 0.0
      %v1321 = vmax.f32 %v1261, 0.0
      %v1322 = vmax.f32 %v1156, 0.0
      %v1323 = vmax.f32 %v1158, 0.0
      %v1324 = vmax.f32 %v1264, 0.0
      %v1325 = vmax.f32 %v1162, 0.0
      %v1326 = vmax.f32 %v1164, 0.0
      %v1327 = vmax.f32 %v1269, 0.0
      %v1328 = vmax.f32 %v1166, 0.0
      %v1329 = vmax.f32 %v1168, 0.0
      %v1330 = vmax.f32 %v1272, 0.0
      %v1331 = vmax.f32 %v1172, 0.0
      %v1332 = vmax.f32 %v1174, 0.0
      %v1333 = vmax.f32 %v1277, 0.0
      %v1334 = vmax.f32 %v1176, 0.0
      %v1335 = vmax.f32 %v1178, 0.0
      %v1336 = vmax.f32 %v1280, 0.0
      %v1337 = vmax.f32 %v1182, 0.0
      %v1338 = vmax.f32 %v1184, 0.0
      %v1339 = vmax.f32 %v1285, 0.0
      %v1340 = vmax.f32 %v1186, 0.0
      %v1341 = vmax.f32 %v1188, 0.0
      %v1342 = vmax.f32 %v1288, 0.0
      %v1343 = vmax.f32 %v1192, 0.0
      %v1344 = vmax.f32 %v1194, 0.0
      %v1345 = vmax.f32 %v1293, 0.0
      %v1346 = vmax.f32 %v1196, 0.0
      %v1347 = vmax.f32 %v1198, 0.0
      %v1348 = vmax.f32 %v1296, 0.0
      %v1349 = vmax.f32 %v1202, 0.0
      %v1350 = vmax.f32 %v1204, 0.0
      %v1351 = vmax.f32 %v1301, 0.0
      %v1352 = vmax.f32 %v1206, 0.0
      %v1353 = vmax.f32 %v1208, 0.0
      %v1354 = vmax.f32 %v1304, 0.0
      %v1355 = vld [vmem:[%s5] sm:$0xf]
      %v1356 = vld [vmem:[%s5 + $0x4] sm:$0xf]
      %v1357 = vld [vmem:[%s5 + $0x8] sm:$0xf]
      %v1358 = vld [vmem:[%s5 + $0xc] sm:$0xf]
      %v1359 = vld [vmem:[%s5 + $0x10] sm:$0x3]
      %v1360 = vpack.c.bf16 %v1310, %v1307
      %v1361 = vpack.c.bf16 %v1311, %v1308
      %v1362 = vpack.c.bf16 %v1312, %v1309
      %v1363 = vpack.c.bf16 %v1316, %v1313
      %v1364 = vpack.c.bf16 %v1317, %v1314
      %v1365 = vpack.c.bf16 %v1318, %v1315
      %v1366 = vpack.c.bf16 %v1322, %v1319
      %v1367 = vpack.c.bf16 %v1323, %v1320
      %v1368 = vpack.c.bf16 %v1324, %v1321
      %v1369 = vpack.c.bf16 %v1328, %v1325
      %v1370 = vpack.c.bf16 %v1329, %v1326
      %v1371 = vpack.c.bf16 %v1330, %v1327
      %v1372 = vpack.c.bf16 %v1334, %v1331
      %v1373 = vpack.c.bf16 %v1335, %v1332
      %v1374 = vpack.c.bf16 %v1336, %v1333
      %v1375 = vpack.c.bf16 %v1340, %v1337
      %v1376 = vpack.c.bf16 %v1341, %v1338
      %v1377 = vpack.c.bf16 %v1342, %v1339
      %v1378 = vpack.c.bf16 %v1346, %v1343
      %v1379 = vpack.c.bf16 %v1347, %v1344
      %v1380 = vpack.c.bf16 %v1348, %v1345
      %v1381 = vpack.c.bf16 %v1352, %v1349
      %v1382 = vpack.c.bf16 %v1353, %v1350
      %v1383 = vpack.c.bf16 %v1354, %v1351
      %v1384 = vld [vmem:[%s6] sm:$0xff]
      %v1385 = vld [vmem:[%s6 + $0x8] sm:$0xff]
      %v1386 = vld [vmem:[%s6 + $0x10] sm:$0xff]
      %v1387 = vld [vmem:[%s6 + $0x18] sm:$0xff]
      %v1388 = vld [vmem:[%s6 + $0x20] sm:$0xf]
      %1390 = vset.pattern.permute.xlu0 0
      %1391 = vperm.xlu0 %1390, %v1384
      %v1392 = vpop.permute.xlu0 %1391
      %1395 = vset.pattern.permute.xlu0 0
      %1396 = vperm.xlu0 %1395, %v1385
      %v1397 = vpop.permute.xlu0 %1396
      %1400 = vset.pattern.permute.xlu0 0
      %1401 = vperm.xlu0 %1400, %v1386
      %v1402 = vpop.permute.xlu0 %1401
      %1405 = vset.pattern.permute.xlu0 0
      %1406 = vperm.xlu0 %1405, %v1387
      %v1407 = vpop.permute.xlu0 %1406
      %1410 = vset.pattern.permute.xlu0 0
      %1411 = vperm.xlu0 %1410, %v1388
      %v1412 = vpop.permute.xlu0 %1411
      %v1419 = vunpack.c.l.b16 %v1355
      %v1420 = vunpack.c.l.b16 %v1356
      %v1421 = vunpack.c.l.b16 %v1357
      %v1422 = vunpack.c.l.b16 %v1358
      %v1423 = vunpack.c.l.b16 %v1359
      %v1424 = vpack.c.b16 %v1420, %v1419
      %v1425 = vpack.c.b16 %v1422, %v1421
      %v1426 = vpack.c.b16 %v1423, %v1423
      %1430 = vmatprep.subr.bf16.mxu0 %v1361
      %1431 = vmatpush1.bf16.msra.mxu0 %v1360
      %1432 = vmatprep.subr.bf16.mxu0 %v1364
      %1433 = vmatpush1.bf16.msra.mxu0 %v1363
      %1434 = vmatprep.subr.bf16.mxu0 %v1367
      %1435 = vmatpush1.bf16.msra.mxu0 %v1366
      %1436 = vmatprep.subr.bf16.mxu0 %v1370
      %1437 = vmatpush1.bf16.msra.mxu0 %v1369
      %1438 = vmatprep.subr.bf16.mxu0 %v1373
      %1439 = vmatpush1.bf16.msra.mxu0 %v1372
      %1440 = vmatprep.subr.bf16.mxu0 %v1376
      %1441 = vmatpush1.bf16.msra.mxu0 %v1375
      %1442 = vmatprep.subr.bf16.mxu0 %v1379
      %1443 = vmatpush1.bf16.msra.mxu0 %v1378
      %1444 = vmatprep.subr.bf16.mxu0 %v1382
      %1445 = vmatpush1.bf16.msra.mxu0 %v1381
      %1446 = vmatprep.subr.bf16.mxu0 0
      %1447 = vmatpush1.bf16.msra.mxu0 0
      %1448 = vmatprep.subr.bf16.mxu0 0
      %1449 = vmatpush1.bf16.msra.mxu0 0
      %1450 = vmatprep.subr.bf16.mxu0 0
      %1451 = vmatpush1.bf16.msra.mxu0 0
      %1452 = vmatprep.subr.bf16.mxu0 0
      %1453 = vmatpush1.bf16.msra.mxu0 0
      %1454 = vmatprep.subr.bf16.mxu0 0
      %1455 = vmatpush1.bf16.msra.mxu0 0
      %1456 = vmatprep.subr.bf16.mxu0 0
      %1457 = vmatpush1.bf16.msra.mxu0 0
      %1458 = vmatprep.subr.bf16.mxu0 0
      %1459 = vmatpush1.bf16.msra.mxu0 0
      %1460 = vmatprep.subr.bf16.mxu0 0
      %1461 = vmatpush1.bf16.msra.mxu0 0
      %1462 = vmatprep.mubr.bf16.mxu0 0
      %1463 = vmatmul.mubr.bf16.gmra.mrb[0].mxu0 %v1424
      %v1464 = vpop.f32.mrb[0].mxu0
      %v1465 = vadd.f32 %v1392, %v1464
      %v1466 = vpop.f32.mrb[0].mxu0
      %v1467 = vadd.f32 %v1392, %v1466
      %v1468 = vpop.f32.mrb[0].mxu0
      %v1469 = vadd.f32 %v1397, %v1468
      %v1470 = vpop.f32.mrb[0].mxu0
      %v1471 = vadd.f32 %v1397, %v1470
      %1472 = vmatprep.mubr.bf16.mxu0 0
      %1473 = vmatmul.mubr.bf16.gmra.mrb[0].mxu0 %v1425
      %v1474 = vpop.f32.mrb[0].mxu0
      %v1475 = vadd.f32 %v1402, %v1474
      %v1476 = vpop.f32.mrb[0].mxu0
      %v1477 = vadd.f32 %v1402, %v1476
      %v1478 = vpop.f32.mrb[0].mxu0
      %v1479 = vadd.f32 %v1407, %v1478
      %v1480 = vpop.f32.mrb[0].mxu0
      %v1481 = vadd.f32 %v1407, %v1480
      %1482 = vmatprep.mubr.bf16.mxu0 0
      %1483 = vmatmul.mubr.bf16.gmra.mrb[0].mxu0 %v1426
      %v1484 = vpop.f32.mrb[0].mxu0
      %v1485 = vadd.f32 %v1412, %v1484
      %v1486 = vpop.f32.mrb[0].mxu0
      %v1487 = vadd.f32 %v1412, %v1486
      %v1488 = vpop.f32.mrb[0].mxu0
      %v1489 = vpop.f32.mrb[0].mxu0
      %1490 = vdwg.mxu0
      %1491 = vmatprep.subr.bf16.mxu0 0
      %1492 = vmatpush1.bf16.msra.mxu0 %v1362
      %1493 = vmatprep.subr.bf16.mxu0 0
      %1494 = vmatpush1.bf16.msra.mxu0 %v1365
      %1495 = vmatprep.subr.bf16.mxu0 0
      %1496 = vmatpush1.bf16.msra.mxu0 %v1368
      %1497 = vmatprep.subr.bf16.mxu0 0
      %1498 = vmatpush1.bf16.msra.mxu0 %v1371
      %1499 = vmatprep.subr.bf16.mxu0 0
      %1500 = vmatpush1.bf16.msra.mxu0 %v1374
      %1501 = vmatprep.subr.bf16.mxu0 0
      %1502 = vmatpush1.bf16.msra.mxu0 %v1377
      %1503 = vmatprep.subr.bf16.mxu0 0
      %1504 = vmatpush1.bf16.msra.mxu0 %v1380
      %1505 = vmatprep.subr.bf16.mxu0 0
      %1506 = vmatpush1.bf16.msra.mxu0 %v1383
      %1507 = vmatprep.subr.bf16.mxu0 0
      %1508 = vmatpush1.bf16.msra.mxu0 0
      %1509 = vmatprep.subr.bf16.mxu0 0
      %1510 = vmatpush1.bf16.msra.mxu0 0
      %1511 = vmatprep.subr.bf16.mxu0 0
      %1512 = vmatpush1.bf16.msra.mxu0 0
      %1513 = vmatprep.subr.bf16.mxu0 0
      %1514 = vmatpush1.bf16.msra.mxu0 0
      %1515 = vmatprep.subr.bf16.mxu0 0
      %1516 = vmatpush1.bf16.msra.mxu0 0
      %1517 = vmatprep.subr.bf16.mxu0 0
      %1518 = vmatpush1.bf16.msra.mxu0 0
      %1519 = vmatprep.subr.bf16.mxu0 0
      %1520 = vmatpush1.bf16.msra.mxu0 0
      %1521 = vmatprep.subr.bf16.mxu0 0
      %1522 = vmatpush1.bf16.msra.mxu0 0
      %1523 = vmatprep.mubr.bf16.mxu0 0
      %1524 = vmatmul.mubr.bf16.gmra.mrb[0].mxu0 %v1424
      %v1525 = vpop.f32.mrb[0].mxu0
      %v1526 = vadd.f32 %v1392, %v1525
      %v1527 = vpop.f32.mrb[0].mxu0
      %v1528 = vpop.f32.mrb[0].mxu0
      %v1529 = vadd.f32 %v1397, %v1528
      %v1530 = vpop.f32.mrb[0].mxu0
      %1531 = vmatprep.mubr.bf16.mxu0 0
      %1532 = vmatmul.mubr.bf16.gmra.mrb[0].mxu0 %v1425
      %v1533 = vpop.f32.mrb[0].mxu0
      %v1534 = vadd.f32 %v1402, %v1533
      %v1535 = vpop.f32.mrb[0].mxu0
      %v1536 = vpop.f32.mrb[0].mxu0
      %v1537 = vadd.f32 %v1407, %v1536
      %v1538 = vpop.f32.mrb[0].mxu0
      %1539 = vmatprep.mubr.bf16.mxu0 0
      %1540 = vmatmul.mubr.bf16.gmra.mrb[0].mxu0 %v1426
      %v1541 = vpop.f32.mrb[0].mxu0
      %v1542 = vadd.f32 %v1412, %v1541
      %v1543 = vpop.f32.mrb[0].mxu0
      %v1544 = vpop.f32.mrb[0].mxu0
      %v1545 = vpop.f32.mrb[0].mxu0
      %1546 = vdwg.mxu0
      %1547 = vst [vmem:[%s316] sm:$0xff] %v1465
      %1548 = vst [vmem:[%s316 + $0x8] sm:$0xff] %v1467
      %1549 = vst [vmem:[%s316 + $0x10] sm:$0xff] %v1526
      %1550 = vst [vmem:[%s316 + $0x18] sm:$0xff] %v1469
      %1551 = vst [vmem:[%s316 + $0x20] sm:$0xff] %v1471
      %1552 = vst [vmem:[%s316 + $0x28] sm:$0xff] %v1529
      %1553 = vst [vmem:[%s316 + $0x30] sm:$0xff] %v1475
      %1554 = vst [vmem:[%s316 + $0x38] sm:$0xff] %v1477
      %1555 = vst [vmem:[%s316 + $0x40] sm:$0xff] %v1534
      %1556 = vst [vmem:[%s316 + $0x48] sm:$0xff] %v1479
      %1557 = vst [vmem:[%s316 + $0x50] sm:$0xff] %v1481
      %1558 = vst [vmem:[%s316 + $0x58] sm:$0xff] %v1537
      %1559 = vst [vmem:[%s316 + $0x60] sm:$0xf] %v1485
      %1560 = vst [vmem:[%s316 + $0x68] sm:$0xf] %v1487
      %1561 = vst [vmem:[%s316 + $0x70] sm:$0xf] %v1542
      %s1562 = smul.u32 3, %s23
      %p1563 = scmp.lt.s32.totalorder %s22, 1
      %s1564 = scalar_select %p1563, %s22, 1
      %p1565 = scmp.lt.s32.totalorder %s1562, 2
      %s1566 = scalar_select %p1565, %s1562, 2
      %s1567 = smul.addr %s1564, 15
      %s1568 = sadd.s32 %s1566, %s1567
      %s1569 = smul.addr %s1568, 8
      %s1570 = scalar_lea.vmem %s7, %s1569
      // Predicated region
      $region49: #{tpu_custom_call.1} parent=47 // pred_check
        %p1571 = pneg %p204
      $region50: #{tpu_custom_call.1} parent=47 // pred_check_branch
        %1573 = sbr.rel (%p1571) target = $region52
      $region51: #{tpu_custom_call.1} parent=47 // pred_region
        %s1574 = smul.u32 3, %s23
      $region52: #{tpu_custom_call.1} parent=47 // pred_fallthru
        _
    $region48: #{tpu_custom_call.1} parent=5 // pred_fallthru
      _
    %p1575 = scmp.le.s32.totalorder 2, %s13
    // Predicated region
    $region53: #{tpu_custom_call.1} parent=5 // pred_check
      %p1576 = pneg %p1575
    $region54: #{tpu_custom_call.1} parent=5 // pred_check_branch
      %1578 = sbr.rel (%p1576) target = $region56
    $region55: #{tpu_custom_call.1} parent=5 // pred_region
      %s1579 = ssub.s32 %s13, 2
      // Predicated region
      $region57: #{tpu_custom_call.1} parent=55 // pred_check
        %p1580 = pneg %p210
      $region58: #{tpu_custom_call.1} parent=55 // pred_check_branch
        %1582 = sbr.rel (%p1580) target = $region60
      $region59: #{tpu_custom_call.1} parent=55 // pred_region
        %s1583 = smul.u32 3, %s25
        %p1584 = scmp.lt.s32.totalorder %s24, 1
        %s1585 = scalar_select %p1584, %s24, 1
        %p1586 = scmp.lt.s32.totalorder %s1583, 2
        %s1587 = scalar_select %p1586, %s1583, 2
        %s1588 = smul.addr %s1585, 15
        %s1589 = sadd.s32 %s1587, %s1588
        %s1590 = smul.addr %s1589, 8
        %s1591 = scalar_lea.vmem %s7, %s1590
      $region60: #{tpu_custom_call.1} parent=55 // pred_fallthru
        _
    $region56: #{tpu_custom_call.1} parent=5 // pred_fallthru
      _
  $region6: #{tpu_custom_call.1} parent=0 // loop_footer
    %s17 = sadd.s32 1, %s13
  $region7: #{tpu_custom_call.1} parent=0 // loop_footer_branch
    %12 = sbr.rel target = $region3
  $region8: #{tpu_custom_call.1} parent=0 // loop_exit
    _

</llo_original>
